<compile_context>
chip_gen: v7x
topology: tpu7x:2x2x1
jax: 0.10.0
libtpu: 0.0.40
codegen_flags: <defaults>
</compile_context>

<pallas_src>
import functools

import jax
import jax.numpy as jnp
import numpy as np
from jax.experimental import pallas as pl
from jax.experimental.pallas import tpu as pltpu

PRIMITIVES = [
    "none", "max_pool_3x3", "avg_pool_3x3", "skip_connect",
    "sep_conv_3x3", "sep_conv_5x5", "dil_conv_3x3", "dil_conv_5x5",
]

_VMEM_LIMIT = 32 * 1024 * 1024   # portable scoped-VMEM budget (v5e..v7x safe)


# ----------------------------- Pallas kernels -----------------------------

def _stage_kernel(x_ref, mean_ref, invstd_ref, dw_ref, pw_ref,
                  y_ref, stats_ref, pad_ref, *, W, M):
    """Fused (previous-stage BN) -> ReLU -> depthwise 3x3 -> 1x1 conv + BN stats.

    Layout: channels in sublanes, flattened H*W spatial in lanes (lane-dense,
    identical to NCHW memory order, so no transposes anywhere).

    x_ref:      (1, C, HW)        one image (f32 for stage 1, bf16 for stage 2)
    mean_ref:   (C, 1)  f32       previous stage's BN mean   (zeros for stage 1)
    invstd_ref: (C, 1)  f32       previous stage's BN 1/std  (ones  for stage 1)
    dw_ref:     (C, 9)  f32       depthwise weights, tap index = dh*3+dw
    pw_ref:     (O, C)  bf16      pointwise (1x1) weights
    y_ref:      (1, O, HW) bf16   un-normalized stage output (lane-dense store)
    stats_ref:  (O, 2)  f32       [sum, sumsq] accumulated over the whole grid
    pad_ref:    VMEM (C, M+HW+M) f32 scratch with zero halo margins (M >= W+1)
    """
    _, C, HW = x_ref.shape

    # Zero the halo margins once: the scratch persists across grid steps, the
    # margins are never overwritten and the interior is fully rewritten (same
    # extent) on every step.  Requires the grid axis to run sequentially
    # ("arbitrary"), which the stats accumulator below needs anyway.
    @pl.when(pl.program_id(0) == 0)
    def _zero_margins():
        pad_ref[:, 0:M] = jnp.zeros((C, M), jnp.float32)
        pad_ref[:, M + HW:M + HW + M] = jnp.zeros((C, M), jnp.float32)

    # Previous stage's BatchNorm + ReLU, written straight into the scratch
    # interior (single pass over the activation, no extra HBM round trip).
    x = x_ref[0].astype(jnp.float32)
    pad_ref[:, M:M + HW] = jnp.maximum(
        (x - mean_ref[...]) * invstd_ref[...], 0.0)

    # Horizontal zero-padding masks; vertical padding is covered by the zero
    # margins of the flattened layout.
    col = jax.lax.broadcasted_iota(jnp.int32, (1, HW), 1) % W
    ml = (col >= 1).astype(jnp.float32)        # taps that read column w-1
    mr = (col <= W - 2).astype(jnp.float32)    # taps that read column w+1

    # Depthwise 3x3 stencil: 9 lane-shifted taps of the padded image, weights
    # broadcast per channel (sublane); f32 accumulation on the VPU.
    w_all = dw_ref[...]
    acc = jnp.zeros((C, HW), jnp.float32)
    for dh in range(3):
        for dw_ in range(3):
            off = (dh - 1) * W + (dw_ - 1)
            tap = pad_ref[:, M + off:M + off + HW]
            wv = w_all[:, dh * 3 + dw_:dh * 3 + dw_ + 1]      # (C, 1)
            if dw_ == 0:
                wv = wv * ml
            elif dw_ == 2:
                wv = wv * mr
            acc = acc + tap * wv

    # 1x1 conv on the MXU: bf16 operands, f32 accumulation; output stays
    # lane-dense (O, HW).
    y = jnp.dot(pw_ref[...], acc.astype(jnp.bfloat16),
                preferred_element_type=jnp.float32)

    # bf16 inter-stage activation: halves HBM write+read traffic between
    # stages; BN statistics are computed from the same bf16-rounded values so
    # the later normalization is self-consistent.
    y_bf = y.astype(jnp.bfloat16)
    y_ref[0] = y_bf

    yf = y_bf.astype(jnp.float32)
    s = jnp.sum(yf, axis=1, keepdims=True)        # (O, 1)
    q = jnp.sum(yf * yf, axis=1, keepdims=True)   # (O, 1)

    @pl.when(pl.program_id(0) == 0)
    def _init_stats():
        stats_ref[...] = jnp.zeros_like(stats_ref)

    stats_ref[...] += jnp.concatenate([s, q], axis=1)


def _bn_norm_kernel(y_ref, mean_ref, invstd_ref, o_ref):
    """Final BatchNorm normalization on the lane-dense (C, HW) layout."""
    o_ref[0] = (y_ref[0].astype(jnp.float32) - mean_ref[...]) * invstd_ref[...]


# ----------------------------- wrappers -----------------------------------

def _sepconv_stage(x_flat, mean_c, invstd_c, dw_c9, pw_bf16, H, W):
    """One fused stage: pre-BN -> ReLU -> dwconv3x3 (stride 1) -> 1x1 conv."""
    del H  # vertical padding is handled by the scratch margins
    N, C, HW = x_flat.shape
    O = pw_bf16.shape[0]
    M = ((W + 1 + 127) // 128) * 128          # lane-aligned halo margin >= W+1
    kernel = functools.partial(_stage_kernel, W=W, M=M)
    y, stats = pl.pallas_call(
        kernel,
        out_shape=(
            jax.ShapeDtypeStruct((N, O, HW), jnp.bfloat16),
            jax.ShapeDtypeStruct((O, 2), jnp.float32),
        ),
        grid=(N,),
        in_specs=[
            pl.BlockSpec((1, C, HW), lambda n: (n, 0, 0)),
            pl.BlockSpec((C, 1), lambda n: (0, 0)),
            pl.BlockSpec((C, 1), lambda n: (0, 0)),
            pl.BlockSpec((C, 9), lambda n: (0, 0)),
            pl.BlockSpec((O, C), lambda n: (0, 0)),
        ],
        out_specs=(
            pl.BlockSpec((1, O, HW), lambda n: (n, 0, 0)),
            pl.BlockSpec((O, 2), lambda n: (0, 0)),     # resident accumulator
        ),
        scratch_shapes=[pltpu.VMEM((C, 2 * M + HW), jnp.float32)],
        compiler_params=pltpu.CompilerParams(
            # "arbitrary": the BN-stats accumulator and the once-only margin
            # zeroing both rely on sequential execution of the batch axis.
            dimension_semantics=("arbitrary",),
            vmem_limit_bytes=_VMEM_LIMIT),
    )(x_flat, mean_c.reshape(C, 1), invstd_c.reshape(C, 1), dw_c9, pw_bf16)
    return y, stats


def _finalize_bn_stats(stats, count):
    """Per-channel mean / 1/std from accumulated [sum, sumsq]."""
    mean = stats[:, 0] / count
    ex2 = stats[:, 1] / count
    var = jnp.maximum(ex2 - mean * mean, 0.0)
    return mean, jax.lax.rsqrt(var + 1e-5)


def _bn_normalize(y_flat, mean, invstd):
    """Final BatchNorm normalization; emits the NCHW-ordered result directly."""
    N, C, HW = y_flat.shape
    return pl.pallas_call(
        _bn_norm_kernel,
        out_shape=jax.ShapeDtypeStruct((N, C, HW), jnp.float32),
        grid=(N,),
        in_specs=[
            pl.BlockSpec((1, C, HW), lambda n: (n, 0, 0)),
            pl.BlockSpec((C, 1), lambda n: (0, 0)),
            pl.BlockSpec((C, 1), lambda n: (0, 0)),
        ],
        out_specs=pl.BlockSpec((1, C, HW), lambda n: (n, 0, 0)),
        compiler_params=pltpu.CompilerParams(
            dimension_semantics=("parallel",),
            vmem_limit_bytes=_VMEM_LIMIT),
    )(y_flat, mean.reshape(C, 1), invstd.reshape(C, 1))


# --------- pure-JAX reference (also the stride>1 fallback path) ------------

def _sepconv_ref_nchw(x_nchw, params, stride):
    """Reference SepConv forward with the same bf16 intermediate rounding."""
    x = x_nchw.astype(jnp.float32)
    C = x.shape[1]

    def stage(h, dw_c9, pw_oc, s):
        h = jax.nn.relu(h)
        w = dw_c9.reshape(C, 1, 3, 3)
        h = jax.lax.conv_general_dilated(
            h, w, window_strides=(s, s), padding=((1, 1), (1, 1)),
            dimension_numbers=("NCHW", "OIHW", "NCHW"),
            feature_group_count=C,
            precision=jax.lax.Precision.HIGHEST)
        y = jnp.einsum("oc,nchw->nohw", pw_oc.astype(jnp.bfloat16),
                       h.astype(jnp.bfloat16),
                       preferred_element_type=jnp.float32)
        y = y.astype(jnp.bfloat16).astype(jnp.float32)   # inter-stage bf16
        mean = jnp.mean(y, axis=(0, 2, 3), keepdims=True)
        var = jnp.mean(jnp.square(y - mean), axis=(0, 2, 3), keepdims=True)
        return (y - mean) * jax.lax.rsqrt(var + 1e-5)

    h = stage(x, params["dw1"], params["pw1"], stride)
    h = stage(h, params["dw2"], params["pw2"], 1)
    return h


@functools.partial(jax.jit, static_argnames=("stride",))
def sep_conv_3x3(x_nchw, params, stride=1):
    """SepConv(C, C, 3, stride, 1, affine=False) forward; x is NCHW."""
    if stride != 1:
        # TODO(synk): stride>1 (reduction cells) needs a lane-compaction step
        # in the lane-dense layout; fall back to the XLA path there.
        return _sepconv_ref_nchw(x_nchw, params, stride)
    N, C, H, W = x_nchw.shape
    x = x_nchw.reshape(N, C, H * W).astype(jnp.float32)   # free view, no transpose
    pw1 = params["pw1"].astype(jnp.bfloat16)
    pw2 = params["pw2"].astype(jnp.bfloat16)

    zeros = jnp.zeros((C,), jnp.float32)
    ones = jnp.ones((C,), jnp.float32)
    y1, st1 = _sepconv_stage(x, zeros, ones, params["dw1"], pw1, H, W)
    m1, i1 = _finalize_bn_stats(st1, N * H * W)
    y2, st2 = _sepconv_stage(y1, m1, i1, params["dw2"], pw2, H, W)
    m2, i2 = _finalize_bn_stats(st2, N * H * W)
    out = _bn_normalize(y2, m2, i2)
    return out.reshape(N, C, H, W)


class MixedOp:
    """JAX/Pallas port of DARTS MixedOp: forward(feature) = self.ops[0](feature)."""

    def __init__(self, C, stride, edge_mask=None, key=None):
        if edge_mask is None:
            self.primitive = "none"          # default: ops[0] is the Zero op
        else:
            self.primitive = [p for p, m in zip(PRIMITIVES, edge_mask) if m == 1][0]
        self.C, self.stride, self.params = C, stride, None
        if self.primitive == "sep_conv_3x3":
            key = jax.random.PRNGKey(0) if key is None else key
            k1, k2, k3, k4 = jax.random.split(key, 4)
            # Deterministic init in PyTorch layouts: depthwise (C,1,3,3),
            # pointwise (Cout,Cin,1,1); reshaped to kernel-friendly layouts.
            dw1_t = 0.1 * jax.random.normal(k1, (C, 1, 3, 3), jnp.float32)
            pw1_t = 0.1 * jax.random.normal(k2, (C, C, 1, 1), jnp.float32)
            dw2_t = 0.1 * jax.random.normal(k3, (C, 1, 3, 3), jnp.float32)
            pw2_t = 0.1 * jax.random.normal(k4, (C, C, 1, 1), jnp.float32)
            self.params = {
                "dw1": dw1_t[:, 0].reshape(C, 9),     # (C, 9), tap = dh*3+dw
                "pw1": pw1_t[:, :, 0, 0],             # (Cout, Cin)
                "dw2": dw2_t[:, 0].reshape(C, 9),
                "pw2": pw2_t[:, :, 0, 0],
            }
        elif self.primitive == "skip_connect":
            if stride != 1:
                # TODO(synk): FactorizedReduce (skip_connect, stride>1) not ported.
                raise NotImplementedError("skip_connect with stride>1")
        elif self.primitive != "none":
            # TODO(synk): pool / dilated primitives not ported; forward only
            # ever calls ops[0], so they are unreachable in this configuration.
            raise NotImplementedError(self.primitive)

    def __call__(self, feature):  # feature: NCHW
        if self.primitive == "none":  # Zero op
            z = feature * 0.0
            return z[:, :, ::self.stride, ::self.stride] if self.stride > 1 else z
        if self.primitive == "skip_connect":
            return feature
        return sep_conv_3x3(feature, self.params, stride=self.stride)


if __name__ == "__main__":
    N, C, H, W = 2, 4, 16, 16
    stride = 1
    edge_mask = [1 if p == "sep_conv_3x3" else 0 for p in PRIMITIVES]
    op = MixedOp(C, stride, edge_mask=edge_mask, key=jax.random.PRNGKey(0))

    x = jax.random.normal(jax.random.PRNGKey(0), (N, C, H, W), jnp.float32)
    out = jax.block_until_ready(op(x))
    assert out.shape == (N, C, H, W), out.shape

    ref = jax.block_until_ready(_sepconv_ref_nchw(x, op.params, stride))
    np.testing.assert_allclose(np.asarray(out), np.asarray(ref),
                               rtol=5e-3, atol=5e-3)
    print("KERNEL_OK")
</pallas_src>

<mosaic_0001>
module attributes {stable_mosaic.version = 11 : i64} {
  func.func @_stage_kernel(%arg0: i32, %arg1: memref<1x4x256xf32, #tpu.memory_space<vmem>>, %arg2: memref<4x1xf32, #tpu.memory_space<vmem>>, %arg3: memref<4x1xf32, #tpu.memory_space<vmem>>, %arg4: memref<4x9xf32, #tpu.memory_space<vmem>>, %arg5: memref<4x4xbf16, #tpu.memory_space<vmem>>, %arg6: memref<1x4x256xbf16, #tpu.memory_space<vmem>>, %arg7: memref<4x2xf32, #tpu.memory_space<vmem>>, %arg8: memref<4x512xf32, #tpu.memory_space<vmem>>) attributes {dimension_semantics = [#tpu.dimension_semantics<arbitrary>], iteration_bounds = array<i64: 2>, scalar_prefetch = 0 : i64, scratch_operands = 1 : i64, tpu.core_type = #tpu.core_type<tc>, window_params = [{transform_indices = @transform_0, window_bounds = array<i64: 1, 4, 256>}, {pipeline_mode = #tpu.pipeline_mode<synchronous>, transform_indices = @transform_1, window_bounds = array<i64: 4, 1>}, {pipeline_mode = #tpu.pipeline_mode<synchronous>, transform_indices = @transform_2, window_bounds = array<i64: 4, 1>}, {pipeline_mode = #tpu.pipeline_mode<synchronous>, transform_indices = @transform_3, window_bounds = array<i64: 4, 9>}, {pipeline_mode = #tpu.pipeline_mode<synchronous>, transform_indices = @transform_4, window_bounds = array<i64: 4, 4>}, {transform_indices = @transform_5, window_bounds = array<i64: 1, 4, 256>}, {pipeline_mode = #tpu.pipeline_mode<synchronous>, transform_indices = @transform_6, window_bounds = array<i64: 4, 2>}]} {
    %c0_i32 = arith.constant 0 : i32
    %0 = arith.cmpi eq, %arg0, %c0_i32 : i32
    %1 = arith.extui %0 : i1 to i32
    %c0_i32_0 = arith.constant 0 : i32
    %2 = arith.cmpi ne, %1, %c0_i32_0 : i32
    scf.if %2 {
      %cst_40 = arith.constant 0.000000e+00 : f32
      %118 = vector.broadcast %cst_40 : f32 to vector<4x128xf32>
      %c0_41 = arith.constant 0 : index
      %c0_42 = arith.constant 0 : index
      %119 = vector.load %arg8[%c0_41, %c0_42] : memref<4x512xf32, #tpu.memory_space<vmem>>, vector<4x128xf32>
      tpu.vector_store %arg8[%c0_41, %c0_42], %118 {strides = array<i32>} : memref<4x512xf32, #tpu.memory_space<vmem>>, vector<4x128xf32>,
      %cst_43 = arith.constant 0.000000e+00 : f32
      %120 = vector.broadcast %cst_43 : f32 to vector<4x128xf32>
      %c0_44 = arith.constant 0 : index
      %c384 = arith.constant 384 : index
      %121 = vector.load %arg8[%c0_44, %c384] : memref<4x512xf32, #tpu.memory_space<vmem>>, vector<4x128xf32>
      tpu.vector_store %arg8[%c0_44, %c384], %120 {strides = array<i32>} : memref<4x512xf32, #tpu.memory_space<vmem>>, vector<4x128xf32>,
    } else {
    }
    %c0 = arith.constant 0 : index
    %c0_1 = arith.constant 0 : index
    %c0_2 = arith.constant 0 : index
    %3 = vector.load %arg1[%c0, %c0_1, %c0_2] : memref<1x4x256xf32, #tpu.memory_space<vmem>>, vector<1x4x256xf32>
    %4 = vector.shape_cast %3 : vector<1x4x256xf32> to vector<4x256xf32>
    %c0_3 = arith.constant 0 : index
    %c0_4 = arith.constant 0 : index
    %5 = vector.load %arg2[%c0_3, %c0_4] : memref<4x1xf32, #tpu.memory_space<vmem>>, vector<4x1xf32>
    %6 = vector.broadcast %5 : vector<4x1xf32> to vector<4x256xf32>
    %7 = arith.subf %4, %6 : vector<4x256xf32>
    %c0_5 = arith.constant 0 : index
    %c0_6 = arith.constant 0 : index
    %8 = vector.load %arg3[%c0_5, %c0_6] : memref<4x1xf32, #tpu.memory_space<vmem>>, vector<4x1xf32>
    %9 = vector.broadcast %8 : vector<4x1xf32> to vector<4x256xf32>
    %10 = arith.mulf %7, %9 : vector<4x256xf32>
    %cst = arith.constant 0.000000e+00 : f32
    %11 = vector.broadcast %cst : f32 to vector<4x256xf32>
    %12 = arith.maximumf %10, %11 : vector<4x256xf32>
    %c0_7 = arith.constant 0 : index
    %c128 = arith.constant 128 : index
    %13 = vector.load %arg8[%c0_7, %c128] : memref<4x512xf32, #tpu.memory_space<vmem>>, vector<4x256xf32>
    tpu.vector_store %arg8[%c0_7, %c128], %12 {strides = array<i32>} : memref<4x512xf32, #tpu.memory_space<vmem>>, vector<4x256xf32>,
    %14 = tpu.iota {dimensions = array<i32: 1>} : vector<1x256xi32>
    %c16_i32 = arith.constant 16 : i32
    %c0_i32_8 = arith.constant 0 : i32
    %15 = arith.cmpi eq, %c16_i32, %c0_i32_8 : i32
    %c1_i32 = arith.constant 1 : i32
    %16 = arith.select %15, %c1_i32, %c16_i32 : i32
    %17 = vector.broadcast %16 : i32 to vector<1x256xi32>
    %18 = arith.remsi %14, %17 : vector<1x256xi32>
    %c0_i32_9 = arith.constant 0 : i32
    %19 = vector.broadcast %c0_i32_9 : i32 to vector<1x256xi32>
    %20 = arith.cmpi ne, %18, %19 : vector<1x256xi32>
    %c0_i32_10 = arith.constant 0 : i32
    %21 = vector.broadcast %c0_i32_10 : i32 to vector<1x256xi32>
    %22 = arith.cmpi slt, %18, %21 : vector<1x256xi32>
    %c0_i32_11 = arith.constant 0 : i32
    %23 = arith.cmpi slt, %16, %c0_i32_11 : i32
    %24 = vector.broadcast %23 : i1 to vector<1x256xi1>
    %25 = vector.broadcast %24 : vector<1x256xi1> to vector<1x256xi1>
    %26 = arith.xori %22, %25 : vector<1x256xi1>
    %27 = arith.andi %26, %20 : vector<1x256xi1>
    %28 = vector.broadcast %16 : i32 to vector<1x256xi32>
    %29 = arith.addi %18, %28 : vector<1x256xi32>
    %30 = arith.select %27, %29, %18 : vector<1x256xi1>, vector<1x256xi32>
    %c1_i32_12 = arith.constant 1 : i32
    %31 = vector.broadcast %c1_i32_12 : i32 to vector<1x256xi32>
    %32 = arith.cmpi sge, %30, %31 : vector<1x256xi32>
    %33 = arith.extui %32 : vector<1x256xi1> to vector<1x256xi32>
    %34 = arith.sitofp %33 : vector<1x256xi32> to vector<1x256xf32>
    %c14_i32 = arith.constant 14 : i32
    %35 = vector.broadcast %c14_i32 : i32 to vector<1x256xi32>
    %36 = arith.cmpi sle, %30, %35 : vector<1x256xi32>
    %37 = arith.extui %36 : vector<1x256xi1> to vector<1x256xi32>
    %38 = arith.sitofp %37 : vector<1x256xi32> to vector<1x256xf32>
    %c0_13 = arith.constant 0 : index
    %c0_14 = arith.constant 0 : index
    %39 = vector.load %arg4[%c0_13, %c0_14] : memref<4x9xf32, #tpu.memory_space<vmem>>, vector<4x9xf32>
    %cst_15 = arith.constant 0.000000e+00 : f32
    %40 = vector.broadcast %cst_15 : f32 to vector<4x256xf32>
    %c0_16 = arith.constant 0 : index
    %c111 = arith.constant 111 : index
    %41 = vector.load %arg8[%c0_16, %c111] : memref<4x512xf32, #tpu.memory_space<vmem>>, vector<4x256xf32>
    %42 = vector.extract_strided_slice %39 {offsets = [0, 0], sizes = [4, 1], strides = [1, 1]} : vector<4x9xf32> to vector<4x1xf32>
    %43 = vector.broadcast %42 : vector<4x1xf32> to vector<4x256xf32>
    %44 = vector.broadcast %34 : vector<1x256xf32> to vector<4x256xf32>
    %45 = arith.mulf %43, %44 : vector<4x256xf32>
    %46 = arith.mulf %41, %45 : vector<4x256xf32>
    %47 = arith.addf %40, %46 : vector<4x256xf32>
    %c0_17 = arith.constant 0 : index
    %c112 = arith.constant 112 : index
    %48 = vector.load %arg8[%c0_17, %c112] : memref<4x512xf32, #tpu.memory_space<vmem>>, vector<4x256xf32>
    %49 = vector.extract_strided_slice %39 {offsets = [0, 1], sizes = [4, 1], strides = [1, 1]} : vector<4x9xf32> to vector<4x1xf32>
    %50 = vector.broadcast %49 : vector<4x1xf32> to vector<4x256xf32>
    %51 = arith.mulf %48, %50 : vector<4x256xf32>
    %52 = arith.addf %47, %51 : vector<4x256xf32>
    %c0_18 = arith.constant 0 : index
    %c113 = arith.constant 113 : index
    %53 = vector.load %arg8[%c0_18, %c113] : memref<4x512xf32, #tpu.memory_space<vmem>>, vector<4x256xf32>
    %54 = vector.extract_strided_slice %39 {offsets = [0, 2], sizes = [4, 1], strides = [1, 1]} : vector<4x9xf32> to vector<4x1xf32>
    %55 = vector.broadcast %54 : vector<4x1xf32> to vector<4x256xf32>
    %56 = vector.broadcast %38 : vector<1x256xf32> to vector<4x256xf32>
    %57 = arith.mulf %55, %56 : vector<4x256xf32>
    %58 = arith.mulf %53, %57 : vector<4x256xf32>
    %59 = arith.addf %52, %58 : vector<4x256xf32>
    %c0_19 = arith.constant 0 : index
    %c127 = arith.constant 127 : index
    %60 = vector.load %arg8[%c0_19, %c127] : memref<4x512xf32, #tpu.memory_space<vmem>>, vector<4x256xf32>
    %61 = vector.extract_strided_slice %39 {offsets = [0, 3], sizes = [4, 1], strides = [1, 1]} : vector<4x9xf32> to vector<4x1xf32>
    %62 = vector.broadcast %61 : vector<4x1xf32> to vector<4x256xf32>
    %63 = vector.broadcast %34 : vector<1x256xf32> to vector<4x256xf32>
    %64 = arith.mulf %62, %63 : vector<4x256xf32>
    %65 = arith.mulf %60, %64 : vector<4x256xf32>
    %66 = arith.addf %59, %65 : vector<4x256xf32>
    %c0_20 = arith.constant 0 : index
    %c128_21 = arith.constant 128 : index
    %67 = vector.load %arg8[%c0_20, %c128_21] : memref<4x512xf32, #tpu.memory_space<vmem>>, vector<4x256xf32>
    %68 = vector.extract_strided_slice %39 {offsets = [0, 4], sizes = [4, 1], strides = [1, 1]} : vector<4x9xf32> to vector<4x1xf32>
    %69 = vector.broadcast %68 : vector<4x1xf32> to vector<4x256xf32>
    %70 = arith.mulf %67, %69 : vector<4x256xf32>
    %71 = arith.addf %66, %70 : vector<4x256xf32>
    %c0_22 = arith.constant 0 : index
    %c129 = arith.constant 129 : index
    %72 = vector.load %arg8[%c0_22, %c129] : memref<4x512xf32, #tpu.memory_space<vmem>>, vector<4x256xf32>
    %73 = vector.extract_strided_slice %39 {offsets = [0, 5], sizes = [4, 1], strides = [1, 1]} : vector<4x9xf32> to vector<4x1xf32>
    %74 = vector.broadcast %73 : vector<4x1xf32> to vector<4x256xf32>
    %75 = vector.broadcast %38 : vector<1x256xf32> to vector<4x256xf32>
    %76 = arith.mulf %74, %75 : vector<4x256xf32>
    %77 = arith.mulf %72, %76 : vector<4x256xf32>
    %78 = arith.addf %71, %77 : vector<4x256xf32>
    %c0_23 = arith.constant 0 : index
    %c143 = arith.constant 143 : index
    %79 = vector.load %arg8[%c0_23, %c143] : memref<4x512xf32, #tpu.memory_space<vmem>>, vector<4x256xf32>
    %80 = vector.extract_strided_slice %39 {offsets = [0, 6], sizes = [4, 1], strides = [1, 1]} : vector<4x9xf32> to vector<4x1xf32>
    %81 = vector.broadcast %80 : vector<4x1xf32> to vector<4x256xf32>
    %82 = vector.broadcast %34 : vector<1x256xf32> to vector<4x256xf32>
    %83 = arith.mulf %81, %82 : vector<4x256xf32>
    %84 = arith.mulf %79, %83 : vector<4x256xf32>
    %85 = arith.addf %78, %84 : vector<4x256xf32>
    %c0_24 = arith.constant 0 : index
    %c144 = arith.constant 144 : index
    %86 = vector.load %arg8[%c0_24, %c144] : memref<4x512xf32, #tpu.memory_space<vmem>>, vector<4x256xf32>
    %87 = vector.extract_strided_slice %39 {offsets = [0, 7], sizes = [4, 1], strides = [1, 1]} : vector<4x9xf32> to vector<4x1xf32>
    %88 = vector.broadcast %87 : vector<4x1xf32> to vector<4x256xf32>
    %89 = arith.mulf %86, %88 : vector<4x256xf32>
    %90 = arith.addf %85, %89 : vector<4x256xf32>
    %c0_25 = arith.constant 0 : index
    %c145 = arith.constant 145 : index
    %91 = vector.load %arg8[%c0_25, %c145] : memref<4x512xf32, #tpu.memory_space<vmem>>, vector<4x256xf32>
    %92 = vector.extract_strided_slice %39 {offsets = [0, 8], sizes = [4, 1], strides = [1, 1]} : vector<4x9xf32> to vector<4x1xf32>
    %93 = vector.broadcast %92 : vector<4x1xf32> to vector<4x256xf32>
    %94 = vector.broadcast %38 : vector<1x256xf32> to vector<4x256xf32>
    %95 = arith.mulf %93, %94 : vector<4x256xf32>
    %96 = arith.mulf %91, %95 : vector<4x256xf32>
    %97 = arith.addf %90, %96 : vector<4x256xf32>
    %c0_26 = arith.constant 0 : index
    %c0_27 = arith.constant 0 : index
    %98 = vector.load %arg5[%c0_26, %c0_27] : memref<4x4xbf16, #tpu.memory_space<vmem>>, vector<4x4xbf16>
    %99 = arith.truncf %97 : vector<4x256xf32> to vector<4x256xbf16>
    %cst_28 = arith.constant dense<0.000000e+00> : vector<4x256xf32>
    %100 = tpu.matmul %98, %99, %cst_28 {dimension_numbers = #tpu.dot_dimension_numbers<[1], [0], [0], [1], [0, 0, 1, 1], [], []>} : vector<4x4xbf16>, vector<4x256xbf16>, vector<4x256xf32> -> vector<4x256xf32>
    %101 = arith.truncf %100 : vector<4x256xf32> to vector<4x256xbf16>
    %c0_29 = arith.constant 0 : index
    %c0_30 = arith.constant 0 : index
    %c0_31 = arith.constant 0 : index
    %102 = vector.load %arg6[%c0_29, %c0_30, %c0_31] : memref<1x4x256xbf16, #tpu.memory_space<vmem>>, vector<1x4x256xbf16>
    %103 = vector.shape_cast %102 : vector<1x4x256xbf16> to vector<4x256xbf16>
    %104 = vector.shape_cast %101 : vector<4x256xbf16> to vector<1x4x256xbf16>
    tpu.vector_store %arg6[%c0_29, %c0_30, %c0_31], %104 {strides = array<i32>} : memref<1x4x256xbf16, #tpu.memory_space<vmem>>, vector<1x4x256xbf16>,
    %105 = arith.extf %101 : vector<4x256xbf16> to vector<4x256xf32>
    %cst_32 = arith.constant dense<0.000000e+00> : vector<4xf32>
    %106 = vector.multi_reduction <add>, %105, %cst_32 [1] : vector<4x256xf32> to vector<4xf32>
    %107 = vector.shape_cast %106 : vector<4xf32> to vector<4x1xf32>
    %108 = arith.mulf %105, %105 : vector<4x256xf32>
    %cst_33 = arith.constant dense<0.000000e+00> : vector<4xf32>
    %109 = vector.multi_reduction <add>, %108, %cst_33 [1] : vector<4x256xf32> to vector<4xf32>
    %110 = vector.shape_cast %109 : vector<4xf32> to vector<4x1xf32>
    %c0_i32_34 = arith.constant 0 : i32
    %111 = arith.cmpi eq, %arg0, %c0_i32_34 : i32
    %112 = arith.extui %111 : i1 to i32
    %c0_i32_35 = arith.constant 0 : i32
    %113 = arith.cmpi ne, %112, %c0_i32_35 : i32
    scf.if %113 {
      %cst_40 = arith.constant 0.000000e+00 : f32
      %118 = vector.broadcast %cst_40 : f32 to vector<4x2xf32>
      %c0_41 = arith.constant 0 : index
      %c0_42 = arith.constant 0 : index
      %119 = vector.load %arg7[%c0_41, %c0_42] : memref<4x2xf32, #tpu.memory_space<vmem>>, vector<4x2xf32>
      tpu.vector_store %arg7[%c0_41, %c0_42], %118 {strides = array<i32>} : memref<4x2xf32, #tpu.memory_space<vmem>>, vector<4x2xf32>,
    } else {
    }
    %c0_36 = arith.constant 0 : index
    %c0_37 = arith.constant 0 : index
    %114 = vector.load %arg7[%c0_36, %c0_37] : memref<4x2xf32, #tpu.memory_space<vmem>>, vector<4x2xf32>
    %115 = tpu.concatenate %107, %110 in 1 : vector<4x1xf32>, vector<4x1xf32> -> vector<4x2xf32>
    %116 = arith.addf %114, %115 : vector<4x2xf32>
    %c0_38 = arith.constant 0 : index
    %c0_39 = arith.constant 0 : index
    %117 = vector.load %arg7[%c0_38, %c0_39] : memref<4x2xf32, #tpu.memory_space<vmem>>, vector<4x2xf32>
    tpu.vector_store %arg7[%c0_38, %c0_39], %116 {strides = array<i32>} : memref<4x2xf32, #tpu.memory_space<vmem>>, vector<4x2xf32>,
    return
  }
  func.func @transform_0(%arg0: i32) -> (i32, i32, i32) {
    %c0_i32 = arith.constant 0 : i32
    %c0_i32_0 = arith.constant 0 : i32
    %c0_i32_1 = arith.constant 0 : i32
    return %arg0, %c0_i32, %c0_i32_0 : i32, i32, i32
  }
  func.func @transform_1(%arg0: i32) -> (i32, i32) {
    %c0_i32 = arith.constant 0 : i32
    %c0_i32_0 = arith.constant 0 : i32
    %c0_i32_1 = arith.constant 0 : i32
    return %c0_i32, %c0_i32_0 : i32, i32
  }
  func.func @transform_2(%arg0: i32) -> (i32, i32) {
    %c0_i32 = arith.constant 0 : i32
    %c0_i32_0 = arith.constant 0 : i32
    %c0_i32_1 = arith.constant 0 : i32
    return %c0_i32, %c0_i32_0 : i32, i32
  }
  func.func @transform_3(%arg0: i32) -> (i32, i32) {
    %c0_i32 = arith.constant 0 : i32
    %c0_i32_0 = arith.constant 0 : i32
    %c0_i32_1 = arith.constant 0 : i32
    return %c0_i32, %c0_i32_0 : i32, i32
  }
  func.func @transform_4(%arg0: i32) -> (i32, i32) {
    %c0_i32 = arith.constant 0 : i32
    %c0_i32_0 = arith.constant 0 : i32
    %c0_i32_1 = arith.constant 0 : i32
    return %c0_i32, %c0_i32_0 : i32, i32
  }
  func.func @transform_5(%arg0: i32) -> (i32, i32, i32) {
    %c0_i32 = arith.constant 0 : i32
    %c0_i32_0 = arith.constant 0 : i32
    %c0_i32_1 = arith.constant 0 : i32
    return %arg0, %c0_i32, %c0_i32_0 : i32, i32, i32
  }
  func.func @transform_6(%arg0: i32) -> (i32, i32) {
    %c0_i32 = arith.constant 0 : i32
    %c0_i32_0 = arith.constant 0 : i32
    %c0_i32_1 = arith.constant 0 : i32
    return %c0_i32, %c0_i32_0 : i32, i32
  }
}

module attributes {stable_mosaic.version = 11 : i64} {
  func.func @_bn_norm_kernel(%arg0: i32, %arg1: memref<1x4x256xbf16, #tpu.memory_space<vmem>>, %arg2: memref<4x1xf32, #tpu.memory_space<vmem>>, %arg3: memref<4x1xf32, #tpu.memory_space<vmem>>, %arg4: memref<1x4x256xf32, #tpu.memory_space<vmem>>) attributes {dimension_semantics = [#tpu.dimension_semantics<parallel>], iteration_bounds = array<i64: 2>, scalar_prefetch = 0 : i64, scratch_operands = 0 : i64, tpu.core_type = #tpu.core_type<tc>, window_params = [{transform_indices = @transform_0, window_bounds = array<i64: 1, 4, 256>}, {pipeline_mode = #tpu.pipeline_mode<synchronous>, transform_indices = @transform_1, window_bounds = array<i64: 4, 1>}, {pipeline_mode = #tpu.pipeline_mode<synchronous>, transform_indices = @transform_2, window_bounds = array<i64: 4, 1>}, {transform_indices = @transform_3, window_bounds = array<i64: 1, 4, 256>}]} {
    %c0 = arith.constant 0 : index
    %c0_0 = arith.constant 0 : index
    %c0_1 = arith.constant 0 : index
    %0 = vector.load %arg1[%c0, %c0_0, %c0_1] : memref<1x4x256xbf16, #tpu.memory_space<vmem>>, vector<1x4x256xbf16>
    %1 = vector.shape_cast %0 : vector<1x4x256xbf16> to vector<4x256xbf16>
    %2 = arith.extf %1 : vector<4x256xbf16> to vector<4x256xf32>
    %c0_2 = arith.constant 0 : index
    %c0_3 = arith.constant 0 : index
    %3 = vector.load %arg2[%c0_2, %c0_3] : memref<4x1xf32, #tpu.memory_space<vmem>>, vector<4x1xf32>
    %4 = vector.broadcast %3 : vector<4x1xf32> to vector<4x256xf32>
    %5 = arith.subf %2, %4 : vector<4x256xf32>
    %c0_4 = arith.constant 0 : index
    %c0_5 = arith.constant 0 : index
    %6 = vector.load %arg3[%c0_4, %c0_5] : memref<4x1xf32, #tpu.memory_space<vmem>>, vector<4x1xf32>
    %7 = vector.broadcast %6 : vector<4x1xf32> to vector<4x256xf32>
    %8 = arith.mulf %5, %7 : vector<4x256xf32>
    %c0_6 = arith.constant 0 : index
    %c0_7 = arith.constant 0 : index
    %c0_8 = arith.constant 0 : index
    %9 = vector.load %arg4[%c0_6, %c0_7, %c0_8] : memref<1x4x256xf32, #tpu.memory_space<vmem>>, vector<1x4x256xf32>
    %10 = vector.shape_cast %9 : vector<1x4x256xf32> to vector<4x256xf32>
    %11 = vector.shape_cast %8 : vector<4x256xf32> to vector<1x4x256xf32>
    tpu.vector_store %arg4[%c0_6, %c0_7, %c0_8], %11 {strides = array<i32>} : memref<1x4x256xf32, #tpu.memory_space<vmem>>, vector<1x4x256xf32>,
    return
  }
  func.func @transform_0(%arg0: i32) -> (i32, i32, i32) {
    %c0_i32 = arith.constant 0 : i32
    %c0_i32_0 = arith.constant 0 : i32
    %c0_i32_1 = arith.constant 0 : i32
    return %arg0, %c0_i32, %c0_i32_0 : i32, i32, i32
  }
  func.func @transform_1(%arg0: i32) -> (i32, i32) {
    %c0_i32 = arith.constant 0 : i32
    %c0_i32_0 = arith.constant 0 : i32
    %c0_i32_1 = arith.constant 0 : i32
    return %c0_i32, %c0_i32_0 : i32, i32
  }
  func.func @transform_2(%arg0: i32) -> (i32, i32) {
    %c0_i32 = arith.constant 0 : i32
    %c0_i32_0 = arith.constant 0 : i32
    %c0_i32_1 = arith.constant 0 : i32
    return %c0_i32, %c0_i32_0 : i32, i32
  }
  func.func @transform_3(%arg0: i32) -> (i32, i32, i32) {
    %c0_i32 = arith.constant 0 : i32
    %c0_i32_0 = arith.constant 0 : i32
    %c0_i32_1 = arith.constant 0 : i32
    return %arg0, %c0_i32, %c0_i32_0 : i32, i32, i32
  }
}

module attributes {stable_mosaic.version = 11 : i64} {
  func.func @_stage_kernel(%arg0: i32, %arg1: memref<1x4x256xbf16, #tpu.memory_space<vmem>>, %arg2: memref<4x1xf32, #tpu.memory_space<vmem>>, %arg3: memref<4x1xf32, #tpu.memory_space<vmem>>, %arg4: memref<4x9xf32, #tpu.memory_space<vmem>>, %arg5: memref<4x4xbf16, #tpu.memory_space<vmem>>, %arg6: memref<1x4x256xbf16, #tpu.memory_space<vmem>>, %arg7: memref<4x2xf32, #tpu.memory_space<vmem>>, %arg8: memref<4x512xf32, #tpu.memory_space<vmem>>) attributes {dimension_semantics = [#tpu.dimension_semantics<arbitrary>], iteration_bounds = array<i64: 2>, scalar_prefetch = 0 : i64, scratch_operands = 1 : i64, tpu.core_type = #tpu.core_type<tc>, window_params = [{transform_indices = @transform_0, window_bounds = array<i64: 1, 4, 256>}, {pipeline_mode = #tpu.pipeline_mode<synchronous>, transform_indices = @transform_1, window_bounds = array<i64: 4, 1>}, {pipeline_mode = #tpu.pipeline_mode<synchronous>, transform_indices = @transform_2, window_bounds = array<i64: 4, 1>}, {pipeline_mode = #tpu.pipeline_mode<synchronous>, transform_indices = @transform_3, window_bounds = array<i64: 4, 9>}, {pipeline_mode = #tpu.pipeline_mode<synchronous>, transform_indices = @transform_4, window_bounds = array<i64: 4, 4>}, {transform_indices = @transform_5, window_bounds = array<i64: 1, 4, 256>}, {pipeline_mode = #tpu.pipeline_mode<synchronous>, transform_indices = @transform_6, window_bounds = array<i64: 4, 2>}]} {
    %c0_i32 = arith.constant 0 : i32
    %0 = arith.cmpi eq, %arg0, %c0_i32 : i32
    %1 = arith.extui %0 : i1 to i32
    %c0_i32_0 = arith.constant 0 : i32
    %2 = arith.cmpi ne, %1, %c0_i32_0 : i32
    scf.if %2 {
      %cst_40 = arith.constant 0.000000e+00 : f32
      %119 = vector.broadcast %cst_40 : f32 to vector<4x128xf32>
      %c0_41 = arith.constant 0 : index
      %c0_42 = arith.constant 0 : index
      %120 = vector.load %arg8[%c0_41, %c0_42] : memref<4x512xf32, #tpu.memory_space<vmem>>, vector<4x128xf32>
      tpu.vector_store %arg8[%c0_41, %c0_42], %119 {strides = array<i32>} : memref<4x512xf32, #tpu.memory_space<vmem>>, vector<4x128xf32>,
      %cst_43 = arith.constant 0.000000e+00 : f32
      %121 = vector.broadcast %cst_43 : f32 to vector<4x128xf32>
      %c0_44 = arith.constant 0 : index
      %c384 = arith.constant 384 : index
      %122 = vector.load %arg8[%c0_44, %c384] : memref<4x512xf32, #tpu.memory_space<vmem>>, vector<4x128xf32>
      tpu.vector_store %arg8[%c0_44, %c384], %121 {strides = array<i32>} : memref<4x512xf32, #tpu.memory_space<vmem>>, vector<4x128xf32>,
    } else {
    }
    %c0 = arith.constant 0 : index
    %c0_1 = arith.constant 0 : index
    %c0_2 = arith.constant 0 : index
    %3 = vector.load %arg1[%c0, %c0_1, %c0_2] : memref<1x4x256xbf16, #tpu.memory_space<vmem>>, vector<1x4x256xbf16>
    %4 = vector.shape_cast %3 : vector<1x4x256xbf16> to vector<4x256xbf16>
    %5 = arith.extf %4 : vector<4x256xbf16> to vector<4x256xf32>
    %c0_3 = arith.constant 0 : index
    %c0_4 = arith.constant 0 : index
    %6 = vector.load %arg2[%c0_3, %c0_4] : memref<4x1xf32, #tpu.memory_space<vmem>>, vector<4x1xf32>
    %7 = vector.broadcast %6 : vector<4x1xf32> to vector<4x256xf32>
    %8 = arith.subf %5, %7 : vector<4x256xf32>
    %c0_5 = arith.constant 0 : index
    %c0_6 = arith.constant 0 : index
    %9 = vector.load %arg3[%c0_5, %c0_6] : memref<4x1xf32, #tpu.memory_space<vmem>>, vector<4x1xf32>
    %10 = vector.broadcast %9 : vector<4x1xf32> to vector<4x256xf32>
    %11 = arith.mulf %8, %10 : vector<4x256xf32>
    %cst = arith.constant 0.000000e+00 : f32
    %12 = vector.broadcast %cst : f32 to vector<4x256xf32>
    %13 = arith.maximumf %11, %12 : vector<4x256xf32>
    %c0_7 = arith.constant 0 : index
    %c128 = arith.constant 128 : index
    %14 = vector.load %arg8[%c0_7, %c128] : memref<4x512xf32, #tpu.memory_space<vmem>>, vector<4x256xf32>
    tpu.vector_store %arg8[%c0_7, %c128], %13 {strides = array<i32>} : memref<4x512xf32, #tpu.memory_space<vmem>>, vector<4x256xf32>,
    %15 = tpu.iota {dimensions = array<i32: 1>} : vector<1x256xi32>
    %c16_i32 = arith.constant 16 : i32
    %c0_i32_8 = arith.constant 0 : i32
    %16 = arith.cmpi eq, %c16_i32, %c0_i32_8 : i32
    %c1_i32 = arith.constant 1 : i32
    %17 = arith.select %16, %c1_i32, %c16_i32 : i32
    %18 = vector.broadcast %17 : i32 to vector<1x256xi32>
    %19 = arith.remsi %15, %18 : vector<1x256xi32>
    %c0_i32_9 = arith.constant 0 : i32
    %20 = vector.broadcast %c0_i32_9 : i32 to vector<1x256xi32>
    %21 = arith.cmpi ne, %19, %20 : vector<1x256xi32>
    %c0_i32_10 = arith.constant 0 : i32
    %22 = vector.broadcast %c0_i32_10 : i32 to vector<1x256xi32>
    %23 = arith.cmpi slt, %19, %22 : vector<1x256xi32>
    %c0_i32_11 = arith.constant 0 : i32
    %24 = arith.cmpi slt, %17, %c0_i32_11 : i32
    %25 = vector.broadcast %24 : i1 to vector<1x256xi1>
    %26 = vector.broadcast %25 : vector<1x256xi1> to vector<1x256xi1>
    %27 = arith.xori %23, %26 : vector<1x256xi1>
    %28 = arith.andi %27, %21 : vector<1x256xi1>
    %29 = vector.broadcast %17 : i32 to vector<1x256xi32>
    %30 = arith.addi %19, %29 : vector<1x256xi32>
    %31 = arith.select %28, %30, %19 : vector<1x256xi1>, vector<1x256xi32>
    %c1_i32_12 = arith.constant 1 : i32
    %32 = vector.broadcast %c1_i32_12 : i32 to vector<1x256xi32>
    %33 = arith.cmpi sge, %31, %32 : vector<1x256xi32>
    %34 = arith.extui %33 : vector<1x256xi1> to vector<1x256xi32>
    %35 = arith.sitofp %34 : vector<1x256xi32> to vector<1x256xf32>
    %c14_i32 = arith.constant 14 : i32
    %36 = vector.broadcast %c14_i32 : i32 to vector<1x256xi32>
    %37 = arith.cmpi sle, %31, %36 : vector<1x256xi32>
    %38 = arith.extui %37 : vector<1x256xi1> to vector<1x256xi32>
    %39 = arith.sitofp %38 : vector<1x256xi32> to vector<1x256xf32>
    %c0_13 = arith.constant 0 : index
    %c0_14 = arith.constant 0 : index
    %40 = vector.load %arg4[%c0_13, %c0_14] : memref<4x9xf32, #tpu.memory_space<vmem>>, vector<4x9xf32>
    %cst_15 = arith.constant 0.000000e+00 : f32
    %41 = vector.broadcast %cst_15 : f32 to vector<4x256xf32>
    %c0_16 = arith.constant 0 : index
    %c111 = arith.constant 111 : index
    %42 = vector.load %arg8[%c0_16, %c111] : memref<4x512xf32, #tpu.memory_space<vmem>>, vector<4x256xf32>
    %43 = vector.extract_strided_slice %40 {offsets = [0, 0], sizes = [4, 1], strides = [1, 1]} : vector<4x9xf32> to vector<4x1xf32>
    %44 = vector.broadcast %43 : vector<4x1xf32> to vector<4x256xf32>
    %45 = vector.broadcast %35 : vector<1x256xf32> to vector<4x256xf32>
    %46 = arith.mulf %44, %45 : vector<4x256xf32>
    %47 = arith.mulf %42, %46 : vector<4x256xf32>
    %48 = arith.addf %41, %47 : vector<4x256xf32>
    %c0_17 = arith.constant 0 : index
    %c112 = arith.constant 112 : index
    %49 = vector.load %arg8[%c0_17, %c112] : memref<4x512xf32, #tpu.memory_space<vmem>>, vector<4x256xf32>
    %50 = vector.extract_strided_slice %40 {offsets = [0, 1], sizes = [4, 1], strides = [1, 1]} : vector<4x9xf32> to vector<4x1xf32>
    %51 = vector.broadcast %50 : vector<4x1xf32> to vector<4x256xf32>
    %52 = arith.mulf %49, %51 : vector<4x256xf32>
    %53 = arith.addf %48, %52 : vector<4x256xf32>
    %c0_18 = arith.constant 0 : index
    %c113 = arith.constant 113 : index
    %54 = vector.load %arg8[%c0_18, %c113] : memref<4x512xf32, #tpu.memory_space<vmem>>, vector<4x256xf32>
    %55 = vector.extract_strided_slice %40 {offsets = [0, 2], sizes = [4, 1], strides = [1, 1]} : vector<4x9xf32> to vector<4x1xf32>
    %56 = vector.broadcast %55 : vector<4x1xf32> to vector<4x256xf32>
    %57 = vector.broadcast %39 : vector<1x256xf32> to vector<4x256xf32>
    %58 = arith.mulf %56, %57 : vector<4x256xf32>
    %59 = arith.mulf %54, %58 : vector<4x256xf32>
    %60 = arith.addf %53, %59 : vector<4x256xf32>
    %c0_19 = arith.constant 0 : index
    %c127 = arith.constant 127 : index
    %61 = vector.load %arg8[%c0_19, %c127] : memref<4x512xf32, #tpu.memory_space<vmem>>, vector<4x256xf32>
    %62 = vector.extract_strided_slice %40 {offsets = [0, 3], sizes = [4, 1], strides = [1, 1]} : vector<4x9xf32> to vector<4x1xf32>
    %63 = vector.broadcast %62 : vector<4x1xf32> to vector<4x256xf32>
    %64 = vector.broadcast %35 : vector<1x256xf32> to vector<4x256xf32>
    %65 = arith.mulf %63, %64 : vector<4x256xf32>
    %66 = arith.mulf %61, %65 : vector<4x256xf32>
    %67 = arith.addf %60, %66 : vector<4x256xf32>
    %c0_20 = arith.constant 0 : index
    %c128_21 = arith.constant 128 : index
    %68 = vector.load %arg8[%c0_20, %c128_21] : memref<4x512xf32, #tpu.memory_space<vmem>>, vector<4x256xf32>
    %69 = vector.extract_strided_slice %40 {offsets = [0, 4], sizes = [4, 1], strides = [1, 1]} : vector<4x9xf32> to vector<4x1xf32>
    %70 = vector.broadcast %69 : vector<4x1xf32> to vector<4x256xf32>
    %71 = arith.mulf %68, %70 : vector<4x256xf32>
    %72 = arith.addf %67, %71 : vector<4x256xf32>
    %c0_22 = arith.constant 0 : index
    %c129 = arith.constant 129 : index
    %73 = vector.load %arg8[%c0_22, %c129] : memref<4x512xf32, #tpu.memory_space<vmem>>, vector<4x256xf32>
    %74 = vector.extract_strided_slice %40 {offsets = [0, 5], sizes = [4, 1], strides = [1, 1]} : vector<4x9xf32> to vector<4x1xf32>
    %75 = vector.broadcast %74 : vector<4x1xf32> to vector<4x256xf32>
    %76 = vector.broadcast %39 : vector<1x256xf32> to vector<4x256xf32>
    %77 = arith.mulf %75, %76 : vector<4x256xf32>
    %78 = arith.mulf %73, %77 : vector<4x256xf32>
    %79 = arith.addf %72, %78 : vector<4x256xf32>
    %c0_23 = arith.constant 0 : index
    %c143 = arith.constant 143 : index
    %80 = vector.load %arg8[%c0_23, %c143] : memref<4x512xf32, #tpu.memory_space<vmem>>, vector<4x256xf32>
    %81 = vector.extract_strided_slice %40 {offsets = [0, 6], sizes = [4, 1], strides = [1, 1]} : vector<4x9xf32> to vector<4x1xf32>
    %82 = vector.broadcast %81 : vector<4x1xf32> to vector<4x256xf32>
    %83 = vector.broadcast %35 : vector<1x256xf32> to vector<4x256xf32>
    %84 = arith.mulf %82, %83 : vector<4x256xf32>
    %85 = arith.mulf %80, %84 : vector<4x256xf32>
    %86 = arith.addf %79, %85 : vector<4x256xf32>
    %c0_24 = arith.constant 0 : index
    %c144 = arith.constant 144 : index
    %87 = vector.load %arg8[%c0_24, %c144] : memref<4x512xf32, #tpu.memory_space<vmem>>, vector<4x256xf32>
    %88 = vector.extract_strided_slice %40 {offsets = [0, 7], sizes = [4, 1], strides = [1, 1]} : vector<4x9xf32> to vector<4x1xf32>
    %89 = vector.broadcast %88 : vector<4x1xf32> to vector<4x256xf32>
    %90 = arith.mulf %87, %89 : vector<4x256xf32>
    %91 = arith.addf %86, %90 : vector<4x256xf32>
    %c0_25 = arith.constant 0 : index
    %c145 = arith.constant 145 : index
    %92 = vector.load %arg8[%c0_25, %c145] : memref<4x512xf32, #tpu.memory_space<vmem>>, vector<4x256xf32>
    %93 = vector.extract_strided_slice %40 {offsets = [0, 8], sizes = [4, 1], strides = [1, 1]} : vector<4x9xf32> to vector<4x1xf32>
    %94 = vector.broadcast %93 : vector<4x1xf32> to vector<4x256xf32>
    %95 = vector.broadcast %39 : vector<1x256xf32> to vector<4x256xf32>
    %96 = arith.mulf %94, %95 : vector<4x256xf32>
    %97 = arith.mulf %92, %96 : vector<4x256xf32>
    %98 = arith.addf %91, %97 : vector<4x256xf32>
    %c0_26 = arith.constant 0 : index
    %c0_27 = arith.constant 0 : index
    %99 = vector.load %arg5[%c0_26, %c0_27] : memref<4x4xbf16, #tpu.memory_space<vmem>>, vector<4x4xbf16>
    %100 = arith.truncf %98 : vector<4x256xf32> to vector<4x256xbf16>
    %cst_28 = arith.constant dense<0.000000e+00> : vector<4x256xf32>
    %101 = tpu.matmul %99, %100, %cst_28 {dimension_numbers = #tpu.dot_dimension_numbers<[1], [0], [0], [1], [0, 0, 1, 1], [], []>} : vector<4x4xbf16>, vector<4x256xbf16>, vector<4x256xf32> -> vector<4x256xf32>
    %102 = arith.truncf %101 : vector<4x256xf32> to vector<4x256xbf16>
    %c0_29 = arith.constant 0 : index
    %c0_30 = arith.constant 0 : index
    %c0_31 = arith.constant 0 : index
    %103 = vector.load %arg6[%c0_29, %c0_30, %c0_31] : memref<1x4x256xbf16, #tpu.memory_space<vmem>>, vector<1x4x256xbf16>
    %104 = vector.shape_cast %103 : vector<1x4x256xbf16> to vector<4x256xbf16>
    %105 = vector.shape_cast %102 : vector<4x256xbf16> to vector<1x4x256xbf16>
    tpu.vector_store %arg6[%c0_29, %c0_30, %c0_31], %105 {strides = array<i32>} : memref<1x4x256xbf16, #tpu.memory_space<vmem>>, vector<1x4x256xbf16>,
    %106 = arith.extf %102 : vector<4x256xbf16> to vector<4x256xf32>
    %cst_32 = arith.constant dense<0.000000e+00> : vector<4xf32>
    %107 = vector.multi_reduction <add>, %106, %cst_32 [1] : vector<4x256xf32> to vector<4xf32>
    %108 = vector.shape_cast %107 : vector<4xf32> to vector<4x1xf32>
    %109 = arith.mulf %106, %106 : vector<4x256xf32>
    %cst_33 = arith.constant dense<0.000000e+00> : vector<4xf32>
    %110 = vector.multi_reduction <add>, %109, %cst_33 [1] : vector<4x256xf32> to vector<4xf32>
    %111 = vector.shape_cast %110 : vector<4xf32> to vector<4x1xf32>
    %c0_i32_34 = arith.constant 0 : i32
    %112 = arith.cmpi eq, %arg0, %c0_i32_34 : i32
    %113 = arith.extui %112 : i1 to i32
    %c0_i32_35 = arith.constant 0 : i32
    %114 = arith.cmpi ne, %113, %c0_i32_35 : i32
    scf.if %114 {
      %cst_40 = arith.constant 0.000000e+00 : f32
      %119 = vector.broadcast %cst_40 : f32 to vector<4x2xf32>
      %c0_41 = arith.constant 0 : index
      %c0_42 = arith.constant 0 : index
      %120 = vector.load %arg7[%c0_41, %c0_42] : memref<4x2xf32, #tpu.memory_space<vmem>>, vector<4x2xf32>
      tpu.vector_store %arg7[%c0_41, %c0_42], %119 {strides = array<i32>} : memref<4x2xf32, #tpu.memory_space<vmem>>, vector<4x2xf32>,
    } else {
    }
    %c0_36 = arith.constant 0 : index
    %c0_37 = arith.constant 0 : index
    %115 = vector.load %arg7[%c0_36, %c0_37] : memref<4x2xf32, #tpu.memory_space<vmem>>, vector<4x2xf32>
    %116 = tpu.concatenate %108, %111 in 1 : vector<4x1xf32>, vector<4x1xf32> -> vector<4x2xf32>
    %117 = arith.addf %115, %116 : vector<4x2xf32>
    %c0_38 = arith.constant 0 : index
    %c0_39 = arith.constant 0 : index
    %118 = vector.load %arg7[%c0_38, %c0_39] : memref<4x2xf32, #tpu.memory_space<vmem>>, vector<4x2xf32>
    tpu.vector_store %arg7[%c0_38, %c0_39], %117 {strides = array<i32>} : memref<4x2xf32, #tpu.memory_space<vmem>>, vector<4x2xf32>,
    return
  }
  func.func @transform_0(%arg0: i32) -> (i32, i32, i32) {
    %c0_i32 = arith.constant 0 : i32
    %c0_i32_0 = arith.constant 0 : i32
    %c0_i32_1 = arith.constant 0 : i32
    return %arg0, %c0_i32, %c0_i32_0 : i32, i32, i32
  }
  func.func @transform_1(%arg0: i32) -> (i32, i32) {
    %c0_i32 = arith.constant 0 : i32
    %c0_i32_0 = arith.constant 0 : i32
    %c0_i32_1 = arith.constant 0 : i32
    return %c0_i32, %c0_i32_0 : i32, i32
  }
  func.func @transform_2(%arg0: i32) -> (i32, i32) {
    %c0_i32 = arith.constant 0 : i32
    %c0_i32_0 = arith.constant 0 : i32
    %c0_i32_1 = arith.constant 0 : i32
    return %c0_i32, %c0_i32_0 : i32, i32
  }
  func.func @transform_3(%arg0: i32) -> (i32, i32) {
    %c0_i32 = arith.constant 0 : i32
    %c0_i32_0 = arith.constant 0 : i32
    %c0_i32_1 = arith.constant 0 : i32
    return %c0_i32, %c0_i32_0 : i32, i32
  }
  func.func @transform_4(%arg0: i32) -> (i32, i32) {
    %c0_i32 = arith.constant 0 : i32
    %c0_i32_0 = arith.constant 0 : i32
    %c0_i32_1 = arith.constant 0 : i32
    return %c0_i32, %c0_i32_0 : i32, i32
  }
  func.func @transform_5(%arg0: i32) -> (i32, i32, i32) {
    %c0_i32 = arith.constant 0 : i32
    %c0_i32_0 = arith.constant 0 : i32
    %c0_i32_1 = arith.constant 0 : i32
    return %arg0, %c0_i32, %c0_i32_0 : i32, i32, i32
  }
  func.func @transform_6(%arg0: i32) -> (i32, i32) {
    %c0_i32 = arith.constant 0 : i32
    %c0_i32_0 = arith.constant 0 : i32
    %c0_i32_1 = arith.constant 0 : i32
    return %c0_i32, %c0_i32_0 : i32, i32
  }
}

</mosaic_0001>

<llo_original>
// kernel: sep_conv_3x3.5
$region0: #{sep_conv_3x3.5}
  #allocation0 [shape = 'u32[]', space=smem, size = 0x4, offset = 0x4, fixed_abs, tag = 'smem constant byte address 0x4 - core index']
  #allocation1 [shape = 'u32[144,128]{1,0:T(1,128)}', space=vmem, size = 0x12000, scoped, tag = 'internal scratch']
  %s0 = inlined_call_operand.vmem [shape: bf16[2,4,256], index: 0, kind: input, shape index: {}]
  %s1 = inlined_call_operand.vmem [shape: f32[4,1], index: 1, kind: input, shape index: {}]
  %s2 = inlined_call_operand.vmem [shape: f32[4,1], index: 2, kind: input, shape index: {}]
  %s3 = inlined_call_operand.vmem [shape: f32[2,4,256], index: 3, kind: output, shape index: {}]
  %s4 = sld [smem:[#allocation0]]
  $region45: #{sep_conv_3x3.5} parent=0
    _
  %s6 = ssub.s32 1, %s4
  %s7 = scalar_select 0, %s6, %s4
  loop: start=0, step=1, limit=4
  $region2: #{sep_conv_3x3.5} parent=0 // loop_pre_header
    _
  $region3: #{sep_conv_3x3.5} parent=0 // loop_header
    %s9 = sphi 0, %s13
    %p10 = scmp.ge.s32.totalorder %s9, 4
    %s19 = sphi 0, %s21
    %s22 = sphi 0, %s19
    %s23 = sphi 0, %s22
    %s39 = sphi 0, %s23
    %s43 = sphi 0, %s43
    %s45 = sphi 0, %s43
    %s46 = sphi 0, %s45
    %s60 = sphi 0, %s46
    %s64 = sphi 0, %s64
    %s66 = sphi 0, %s64
    %s67 = sphi 0, %s66
    %s81 = sphi 0, %s67
    %s87 = sphi 0, %s89
    %s90 = sphi 0, %s87
    %s91 = sphi 0, %s90
    %s107 = sphi 0, %s91
  $region4: #{sep_conv_3x3.5} parent=0 // loop_header_branch
    %12 = sbr.rel (%p10) target = $region8
  $region5: #{sep_conv_3x3.5} parent=0 // loop_body
    %s14 = ssub.s32 %s9, 1
    %s15 = ssub.s32 %s9, 2
    %s16 = sadd.s32 %s9, 1
    %s17 = ssub.s32 %s9, %s16
    %p18 = scmp.eq.s32.totalorder %s17, 0
    %s20 = sadd.s32 %s19, 1
    %s21 = scalar_select %p18, %s19, %s20
    %p24 = pneg %p18
    %p25 = scmp.eq.s32.totalorder %s9, 1
    %p26 = por %p24, %p25
    %p27 = scmp.ne.s32.totalorder %s19, %s22
    %p28 = scmp.eq.s32.totalorder %s9, 0
    %p29 = por %p27, %p28
    %p30 = scmp.ne.s32.totalorder %s19, %s22
    %p31 = scmp.eq.s32.totalorder %s14, 1
    %p32 = por %p30, %p31
    %p33 = scmp.ne.s32.totalorder %s22, %s23
    %p34 = scmp.eq.s32.totalorder %s14, 0
    %p35 = por %p33, %p34
    %p36 = scmp.ne.s32.totalorder %s22, %s23
    %p37 = scmp.eq.s32.totalorder %s15, 1
    %p38 = por %p36, %p37
    %p40 = scmp.ne.s32.totalorder %s23, %s39
    %p41 = scmp.eq.s32.totalorder %s15, 0
    %p42 = por %p40, %p41
    %s44 = sadd.s32 %s43, 1
    %p47 = scmp.eq.s32.totalorder %s9, 1
    %p48 = scmp.ne.s32.totalorder %s43, %s45
    %p49 = scmp.eq.s32.totalorder %s9, 0
    %p50 = por %p48, %p49
    %p51 = scmp.ne.s32.totalorder %s43, %s45
    %p52 = scmp.eq.s32.totalorder %s14, 1
    %p53 = por %p51, %p52
    %p54 = scmp.ne.s32.totalorder %s45, %s46
    %p55 = scmp.eq.s32.totalorder %s14, 0
    %p56 = por %p54, %p55
    %p57 = scmp.ne.s32.totalorder %s45, %s46
    %p58 = scmp.eq.s32.totalorder %s15, 1
    %p59 = por %p57, %p58
    %p61 = scmp.ne.s32.totalorder %s46, %s60
    %p62 = scmp.eq.s32.totalorder %s15, 0
    %p63 = por %p61, %p62
    %s65 = sadd.s32 %s64, 1
    %p68 = scmp.eq.s32.totalorder %s9, 1
    %p69 = scmp.ne.s32.totalorder %s64, %s66
    %p70 = scmp.eq.s32.totalorder %s9, 0
    %p71 = por %p69, %p70
    %p72 = scmp.ne.s32.totalorder %s64, %s66
    %p73 = scmp.eq.s32.totalorder %s14, 1
    %p74 = por %p72, %p73
    %p75 = scmp.ne.s32.totalorder %s66, %s67
    %p76 = scmp.eq.s32.totalorder %s14, 0
    %p77 = por %p75, %p76
    %p78 = scmp.ne.s32.totalorder %s66, %s67
    %p79 = scmp.eq.s32.totalorder %s15, 1
    %p80 = por %p78, %p79
    %p82 = scmp.ne.s32.totalorder %s67, %s81
    %p83 = scmp.eq.s32.totalorder %s15, 0
    %p84 = por %p82, %p83
    %s85 = ssub.s32 %s9, %s16
    %p86 = scmp.eq.s32.totalorder %s85, 0
    %s88 = sadd.s32 %s87, 1
    %s89 = scalar_select %p86, %s87, %s88
    %p92 = pneg %p86
    %p93 = scmp.eq.s32.totalorder %s9, 1
    %p94 = por %p92, %p93
    %p95 = scmp.ne.s32.totalorder %s87, %s90
    %p96 = scmp.eq.s32.totalorder %s9, 0
    %p97 = por %p95, %p96
    %p98 = scmp.ne.s32.totalorder %s87, %s90
    %p99 = scmp.eq.s32.totalorder %s14, 1
    %p100 = por %p98, %p99
    %p101 = scmp.ne.s32.totalorder %s90, %s91
    %p102 = scmp.eq.s32.totalorder %s14, 0
    %p103 = por %p101, %p102
    %p104 = scmp.ne.s32.totalorder %s90, %s91
    %p105 = scmp.eq.s32.totalorder %s15, 1
    %p106 = por %p104, %p105
    %p108 = scmp.ne.s32.totalorder %s91, %s107
    %p109 = scmp.eq.s32.totalorder %s15, 0
    %p110 = por %p108, %p109
    %p111 = scmp.le.s32.totalorder 1, %s9
    %p112 = scmp.lt.s32.totalorder %s9, 3
    %p113 = pnand %p111, %p112
    %p114 = pneg %p113
    // Predicated region
    $region9: #{sep_conv_3x3.5} parent=5 // pred_check
      _
    $region10: #{sep_conv_3x3.5} parent=5 // pred_check_branch
      %116 = sbr.rel (%p113) target = $region12
    $region11: #{sep_conv_3x3.5} parent=5 // pred_region
      %s117 = ssub.s32 %s9, 1
      // Predicated region
      $region13: #{sep_conv_3x3.5} parent=11 // pred_check
        %p118 = pneg %p56
      $region14: #{sep_conv_3x3.5} parent=11 // pred_check_branch
        %120 = sbr.rel (%p118) target = $region16
      $region15: #{sep_conv_3x3.5} parent=11 // pred_region
        _
      $region16: #{sep_conv_3x3.5} parent=11 // pred_fallthru
        _
      // Predicated region
      $region17: #{sep_conv_3x3.5} parent=11 // pred_check
        %p121 = pneg %p77
      $region18: #{sep_conv_3x3.5} parent=11 // pred_check_branch
        %123 = sbr.rel (%p121) target = $region20
      $region19: #{sep_conv_3x3.5} parent=11 // pred_region
        _
      $region20: #{sep_conv_3x3.5} parent=11 // pred_fallthru
        _
    $region12: #{sep_conv_3x3.5} parent=5 // pred_fallthru
      _
    %p124 = scmp.lt.s32.totalorder %s9, 2
    // Predicated region
    $region21: #{sep_conv_3x3.5} parent=5 // pred_check
      %p125 = pneg %p124
    $region22: #{sep_conv_3x3.5} parent=5 // pred_check_branch
      %127 = sbr.rel (%p125) target = $region24
    $region23: #{sep_conv_3x3.5} parent=5 // pred_region
      // Predicated region
      $region25: #{sep_conv_3x3.5} parent=23 // pred_check
        %p128 = pneg %p29
      $region26: #{sep_conv_3x3.5} parent=23 // pred_check_branch
        %130 = sbr.rel (%p128) target = $region28
      $region27: #{sep_conv_3x3.5} parent=23 // pred_region
        %p131 = scmp.lt.s32.totalorder %s9, 1
        %s132 = scalar_select %p131, %s9, 1
        %s133 = smul.addr %s132, 2
        %s134 = smul.addr %s133, 2
        %s135 = scalar_lea.vmem %s0, %s134
      $region28: #{sep_conv_3x3.5} parent=23 // pred_fallthru
        _
    $region24: #{sep_conv_3x3.5} parent=5 // pred_fallthru
      _
    %p136 = scmp.le.s32.totalorder 1, %s9
    %p137 = scmp.lt.s32.totalorder %s9, 3
    %p138 = pnand %p136, %p137
    %p139 = pneg %p138
    // Predicated region
    $region29: #{sep_conv_3x3.5} parent=5 // pred_check
      _
    $region30: #{sep_conv_3x3.5} parent=5 // pred_check_branch
      %141 = sbr.rel (%p138) target = $region32
    $region31: #{sep_conv_3x3.5} parent=5 // pred_region
      %s142 = ssub.s32 %s9, 1
      %p143 = scmp.lt.s32.totalorder %s14, 1
      %s144 = scalar_select %p143, %s14, 1
      %s145 = smul.addr %s144, 2
      %s146 = smul.addr %s145, 2
      %s147 = scalar_lea.vmem %s0, %s146
      %p148 = pneg %p35
      %p149 = pneg %p32
      %p150 = pneg %p56
      %p151 = pneg %p53
      %p152 = pneg %p77
      %p153 = pneg %p74
      %p154 = pneg %p103
      %p155 = pneg %p100
      %p156 = scmp.lt.s32.totalorder %s14, 1
      %s157 = scalar_select %p156, %s14, 1
      %s158 = smul.addr %s157, 2
      %s159 = smul.addr %s158, 4
      %s160 = scalar_lea.vmem %s3, %s159
      %p161 = scmp.lt.s32.totalorder %s14, 1
      %s162 = scalar_select %p161, %s14, 1
      %s163 = smul.addr %s162, 2
      %s164 = smul.addr %s163, 2
      %s165 = scalar_lea.vmem %s0, %s164
      %p166 = scmp.lt.s32.totalorder %s14, 1
      %s167 = scalar_select %p166, %s14, 1
      %s168 = smul.addr %s167, 2
      %s169 = smul.addr %s168, 4
      %s170 = scalar_lea.vmem %s3, %s169
      %v171 = vld [vmem:[%s165] sm:$0xf]
      %v172 = vunpack.c.l.bf16 %v171
      %v173 = vld [vmem:[%s1] sm:$0xf]
      %175 = vset.pattern.permute.xlu0 0
      %176 = vperm.xlu0 %175, %v173
      %v177 = vpop.permute.xlu0 %176
      %v179 = vunpack.c.l.s4 839922192
      %v180 = vunpack.c.0.s8 %v179
      %v181 = vlaneseq
      %v182 = vshrl.u32 %v181, 7
      %v183 = vsub.s32 %v180, %v182
      %v184 = vrot.slane %v177, %v183
      %v186 = vsub.f32 %v172, %v184
      %v187 = vld [vmem:[%s2] sm:$0xf]
      %189 = vset.pattern.permute.xlu0 0
      %190 = vperm.xlu0 %189, %v187
      %v191 = vpop.permute.xlu0 %190
      %v193 = vunpack.c.l.s4 839922192
      %v194 = vunpack.c.0.s8 %v193
      %v195 = vlaneseq
      %v196 = vshrl.u32 %v195, 7
      %v197 = vsub.s32 %v194, %v196
      %v198 = vrot.slane %v191, %v197
      %v200 = vmul.f32 %v186, %v198
      %201 = vst [vmem:[%s170] sm:$0xff] %v200
      %p202 = scmp.lt.s32.totalorder %s14, 1
      %s203 = scalar_select %p202, %s14, 1
      %s204 = smul.addr %s203, 2
      %s205 = smul.addr %s204, 4
      %s206 = scalar_lea.vmem %s3, %s205
      // Predicated region
      $region33: #{sep_conv_3x3.5} parent=31 // pred_check
        %p207 = pneg %p100
      $region34: #{sep_conv_3x3.5} parent=31 // pred_check_branch
        %209 = sbr.rel (%p207) target = $region36
      $region35: #{sep_conv_3x3.5} parent=31 // pred_region
        _
      $region36: #{sep_conv_3x3.5} parent=31 // pred_fallthru
        _
    $region32: #{sep_conv_3x3.5} parent=5 // pred_fallthru
      _
    %p210 = scmp.le.s32.totalorder 2, %s9
    // Predicated region
    $region37: #{sep_conv_3x3.5} parent=5 // pred_check
      %p211 = pneg %p210
    $region38: #{sep_conv_3x3.5} parent=5 // pred_check_branch
      %213 = sbr.rel (%p211) target = $region40
    $region39: #{sep_conv_3x3.5} parent=5 // pred_region
      %s214 = ssub.s32 %s9, 2
      // Predicated region
      $region41: #{sep_conv_3x3.5} parent=39 // pred_check
        %p215 = pneg %p106
      $region42: #{sep_conv_3x3.5} parent=39 // pred_check_branch
        %217 = sbr.rel (%p215) target = $region44
      $region43: #{sep_conv_3x3.5} parent=39 // pred_region
        %p218 = scmp.lt.s32.totalorder %s15, 1
        %s219 = scalar_select %p218, %s15, 1
        %s220 = smul.addr %s219, 2
        %s221 = smul.addr %s220, 4
        %s222 = scalar_lea.vmem %s3, %s221
      $region44: #{sep_conv_3x3.5} parent=39 // pred_fallthru
        _
    $region40: #{sep_conv_3x3.5} parent=5 // pred_fallthru
      _
  $region6: #{sep_conv_3x3.5} parent=0 // loop_footer
    %s13 = sadd.s32 1, %s9
  $region7: #{sep_conv_3x3.5} parent=0 // loop_footer_branch
    %8 = sbr.rel target = $region3
  $region8: #{sep_conv_3x3.5} parent=0 // loop_exit
    _

// kernel: sep_conv_3x3.3
$region0: #{sep_conv_3x3.3}
  #allocation0 [shape = 'u32[]', space=smem, size = 0x4, offset = 0x4, fixed_abs, tag = 'smem constant byte address 0x4 - core index']
  #allocation1 [shape = 'u32[144,128]{1,0:T(1,128)}', space=vmem, size = 0x12000, scoped, tag = 'internal scratch']
  #allocation2 [shape = 'f32[4,512]{1,0:T(4,128)}', space=vmem, size = 0x2000, scoped, tag = 'scratch operand']
  %s0 = inlined_call_operand.vmem [shape: f32[2,4,256], index: 0, kind: input, shape index: {}]
  %s1 = inlined_call_operand.vmem [shape: f32[4,1], index: 1, kind: input, shape index: {}]
  %s2 = inlined_call_operand.vmem [shape: f32[4,1], index: 2, kind: input, shape index: {}]
  %s3 = inlined_call_operand.vmem [shape: f32[4,9], index: 3, kind: input, shape index: {}]
  %s4 = inlined_call_operand.vmem [shape: bf16[4,4], index: 4, kind: input, shape index: {}]
  %s5 = inlined_call_operand.vmem [shape: bf16[2,4,256], index: 5, kind: output, shape index: {0}]
  %s6 = inlined_call_operand.vmem [shape: f32[4,2], index: 6, kind: output, shape index: {1}]
  %7 = xla_tuple %s5, %s6
  %s8 = sld [smem:[#allocation0]]
  $region69: #{sep_conv_3x3.3} parent=0
    _
  %s10 = ssub.s32 1, %s8
  %s11 = scalar_select 0, %s10, %s8
  loop: start=0, step=1, limit=4
  $region2: #{sep_conv_3x3.3} parent=0 // loop_pre_header
    _
  $region3: #{sep_conv_3x3.3} parent=0 // loop_header
    %s13 = sphi 0, %s17
    %p14 = scmp.ge.s32.totalorder %s13, 4
    %s23 = sphi 0, %s25
    %s26 = sphi 0, %s23
    %s27 = sphi 0, %s26
    %s43 = sphi 0, %s27
    %s47 = sphi 0, %s47
    %s49 = sphi 0, %s47
    %s50 = sphi 0, %s49
    %s64 = sphi 0, %s50
    %s68 = sphi 0, %s68
    %s70 = sphi 0, %s68
    %s71 = sphi 0, %s70
    %s85 = sphi 0, %s71
    %s89 = sphi 0, %s89
    %s91 = sphi 0, %s89
    %s92 = sphi 0, %s91
    %s106 = sphi 0, %s92
    %s110 = sphi 0, %s110
    %s112 = sphi 0, %s110
    %s113 = sphi 0, %s112
    %s127 = sphi 0, %s113
    %s133 = sphi 0, %s135
    %s136 = sphi 0, %s133
    %s137 = sphi 0, %s136
    %s153 = sphi 0, %s137
    %s157 = sphi 0, %s157
    %s159 = sphi 0, %s157
    %s160 = sphi 0, %s159
    %s174 = sphi 0, %s160
  $region4: #{sep_conv_3x3.3} parent=0 // loop_header_branch
    %16 = sbr.rel (%p14) target = $region8
  $region5: #{sep_conv_3x3.3} parent=0 // loop_body
    %s18 = ssub.s32 %s13, 1
    %s19 = ssub.s32 %s13, 2
    %s20 = sadd.s32 %s13, 1
    %s21 = ssub.s32 %s13, %s20
    %p22 = scmp.eq.s32.totalorder %s21, 0
    %s24 = sadd.s32 %s23, 1
    %s25 = scalar_select %p22, %s23, %s24
    %p28 = pneg %p22
    %p29 = scmp.eq.s32.totalorder %s13, 1
    %p30 = por %p28, %p29
    %p31 = scmp.ne.s32.totalorder %s23, %s26
    %p32 = scmp.eq.s32.totalorder %s13, 0
    %p33 = por %p31, %p32
    %p34 = scmp.ne.s32.totalorder %s23, %s26
    %p35 = scmp.eq.s32.totalorder %s18, 1
    %p36 = por %p34, %p35
    %p37 = scmp.ne.s32.totalorder %s26, %s27
    %p38 = scmp.eq.s32.totalorder %s18, 0
    %p39 = por %p37, %p38
    %p40 = scmp.ne.s32.totalorder %s26, %s27
    %p41 = scmp.eq.s32.totalorder %s19, 1
    %p42 = por %p40, %p41
    %p44 = scmp.ne.s32.totalorder %s27, %s43
    %p45 = scmp.eq.s32.totalorder %s19, 0
    %p46 = por %p44, %p45
    %s48 = sadd.s32 %s47, 1
    %p51 = scmp.eq.s32.totalorder %s13, 1
    %p52 = scmp.ne.s32.totalorder %s47, %s49
    %p53 = scmp.eq.s32.totalorder %s13, 0
    %p54 = por %p52, %p53
    %p55 = scmp.ne.s32.totalorder %s47, %s49
    %p56 = scmp.eq.s32.totalorder %s18, 1
    %p57 = por %p55, %p56
    %p58 = scmp.ne.s32.totalorder %s49, %s50
    %p59 = scmp.eq.s32.totalorder %s18, 0
    %p60 = por %p58, %p59
    %p61 = scmp.ne.s32.totalorder %s49, %s50
    %p62 = scmp.eq.s32.totalorder %s19, 1
    %p63 = por %p61, %p62
    %p65 = scmp.ne.s32.totalorder %s50, %s64
    %p66 = scmp.eq.s32.totalorder %s19, 0
    %p67 = por %p65, %p66
    %s69 = sadd.s32 %s68, 1
    %p72 = scmp.eq.s32.totalorder %s13, 1
    %p73 = scmp.ne.s32.totalorder %s68, %s70
    %p74 = scmp.eq.s32.totalorder %s13, 0
    %p75 = por %p73, %p74
    %p76 = scmp.ne.s32.totalorder %s68, %s70
    %p77 = scmp.eq.s32.totalorder %s18, 1
    %p78 = por %p76, %p77
    %p79 = scmp.ne.s32.totalorder %s70, %s71
    %p80 = scmp.eq.s32.totalorder %s18, 0
    %p81 = por %p79, %p80
    %p82 = scmp.ne.s32.totalorder %s70, %s71
    %p83 = scmp.eq.s32.totalorder %s19, 1
    %p84 = por %p82, %p83
    %p86 = scmp.ne.s32.totalorder %s71, %s85
    %p87 = scmp.eq.s32.totalorder %s19, 0
    %p88 = por %p86, %p87
    %s90 = sadd.s32 %s89, 1
    %p93 = scmp.eq.s32.totalorder %s13, 1
    %p94 = scmp.ne.s32.totalorder %s89, %s91
    %p95 = scmp.eq.s32.totalorder %s13, 0
    %p96 = por %p94, %p95
    %p97 = scmp.ne.s32.totalorder %s89, %s91
    %p98 = scmp.eq.s32.totalorder %s18, 1
    %p99 = por %p97, %p98
    %p100 = scmp.ne.s32.totalorder %s91, %s92
    %p101 = scmp.eq.s32.totalorder %s18, 0
    %p102 = por %p100, %p101
    %p103 = scmp.ne.s32.totalorder %s91, %s92
    %p104 = scmp.eq.s32.totalorder %s19, 1
    %p105 = por %p103, %p104
    %p107 = scmp.ne.s32.totalorder %s92, %s106
    %p108 = scmp.eq.s32.totalorder %s19, 0
    %p109 = por %p107, %p108
    %s111 = sadd.s32 %s110, 1
    %p114 = scmp.eq.s32.totalorder %s13, 1
    %p115 = scmp.ne.s32.totalorder %s110, %s112
    %p116 = scmp.eq.s32.totalorder %s13, 0
    %p117 = por %p115, %p116
    %p118 = scmp.ne.s32.totalorder %s110, %s112
    %p119 = scmp.eq.s32.totalorder %s18, 1
    %p120 = por %p118, %p119
    %p121 = scmp.ne.s32.totalorder %s112, %s113
    %p122 = scmp.eq.s32.totalorder %s18, 0
    %p123 = por %p121, %p122
    %p124 = scmp.ne.s32.totalorder %s112, %s113
    %p125 = scmp.eq.s32.totalorder %s19, 1
    %p126 = por %p124, %p125
    %p128 = scmp.ne.s32.totalorder %s113, %s127
    %p129 = scmp.eq.s32.totalorder %s19, 0
    %p130 = por %p128, %p129
    %s131 = ssub.s32 %s13, %s20
    %p132 = scmp.eq.s32.totalorder %s131, 0
    %s134 = sadd.s32 %s133, 1
    %s135 = scalar_select %p132, %s133, %s134
    %p138 = pneg %p132
    %p139 = scmp.eq.s32.totalorder %s13, 1
    %p140 = por %p138, %p139
    %p141 = scmp.ne.s32.totalorder %s133, %s136
    %p142 = scmp.eq.s32.totalorder %s13, 0
    %p143 = por %p141, %p142
    %p144 = scmp.ne.s32.totalorder %s133, %s136
    %p145 = scmp.eq.s32.totalorder %s18, 1
    %p146 = por %p144, %p145
    %p147 = scmp.ne.s32.totalorder %s136, %s137
    %p148 = scmp.eq.s32.totalorder %s18, 0
    %p149 = por %p147, %p148
    %p150 = scmp.ne.s32.totalorder %s136, %s137
    %p151 = scmp.eq.s32.totalorder %s19, 1
    %p152 = por %p150, %p151
    %p154 = scmp.ne.s32.totalorder %s137, %s153
    %p155 = scmp.eq.s32.totalorder %s19, 0
    %p156 = por %p154, %p155
    %s158 = sadd.s32 %s157, 1
    %p161 = scmp.eq.s32.totalorder %s13, 1
    %p162 = scmp.ne.s32.totalorder %s157, %s159
    %p163 = scmp.eq.s32.totalorder %s13, 0
    %p164 = por %p162, %p163
    %p165 = scmp.ne.s32.totalorder %s157, %s159
    %p166 = scmp.eq.s32.totalorder %s18, 1
    %p167 = por %p165, %p166
    %p168 = scmp.ne.s32.totalorder %s159, %s160
    %p169 = scmp.eq.s32.totalorder %s18, 0
    %p170 = por %p168, %p169
    %p171 = scmp.ne.s32.totalorder %s159, %s160
    %p172 = scmp.eq.s32.totalorder %s19, 1
    %p173 = por %p171, %p172
    %p175 = scmp.ne.s32.totalorder %s160, %s174
    %p176 = scmp.eq.s32.totalorder %s19, 0
    %p177 = por %p175, %p176
    %p178 = scmp.le.s32.totalorder 1, %s13
    %p179 = scmp.lt.s32.totalorder %s13, 3
    %p180 = pnand %p178, %p179
    %p181 = pneg %p180
    // Predicated region
    $region9: #{sep_conv_3x3.3} parent=5 // pred_check
      _
    $region10: #{sep_conv_3x3.3} parent=5 // pred_check_branch
      %183 = sbr.rel (%p180) target = $region12
    $region11: #{sep_conv_3x3.3} parent=5 // pred_region
      %s184 = ssub.s32 %s13, 1
      // Predicated region
      $region13: #{sep_conv_3x3.3} parent=11 // pred_check
        %p185 = pneg %p60
      $region14: #{sep_conv_3x3.3} parent=11 // pred_check_branch
        %187 = sbr.rel (%p185) target = $region16
      $region15: #{sep_conv_3x3.3} parent=11 // pred_region
        _
      $region16: #{sep_conv_3x3.3} parent=11 // pred_fallthru
        _
      // Predicated region
      $region17: #{sep_conv_3x3.3} parent=11 // pred_check
        %p188 = pneg %p81
      $region18: #{sep_conv_3x3.3} parent=11 // pred_check_branch
        %190 = sbr.rel (%p188) target = $region20
      $region19: #{sep_conv_3x3.3} parent=11 // pred_region
        _
      $region20: #{sep_conv_3x3.3} parent=11 // pred_fallthru
        _
      // Predicated region
      $region21: #{sep_conv_3x3.3} parent=11 // pred_check
        %p191 = pneg %p102
      $region22: #{sep_conv_3x3.3} parent=11 // pred_check_branch
        %193 = sbr.rel (%p191) target = $region24
      $region23: #{sep_conv_3x3.3} parent=11 // pred_region
        _
      $region24: #{sep_conv_3x3.3} parent=11 // pred_fallthru
        _
      // Predicated region
      $region25: #{sep_conv_3x3.3} parent=11 // pred_check
        %p194 = pneg %p123
      $region26: #{sep_conv_3x3.3} parent=11 // pred_check_branch
        %196 = sbr.rel (%p194) target = $region28
      $region27: #{sep_conv_3x3.3} parent=11 // pred_region
        _
      $region28: #{sep_conv_3x3.3} parent=11 // pred_fallthru
        _
    $region12: #{sep_conv_3x3.3} parent=5 // pred_fallthru
      _
    %p197 = scmp.lt.s32.totalorder %s13, 2
    // Predicated region
    $region29: #{sep_conv_3x3.3} parent=5 // pred_check
      %p198 = pneg %p197
    $region30: #{sep_conv_3x3.3} parent=5 // pred_check_branch
      %200 = sbr.rel (%p198) target = $region32
    $region31: #{sep_conv_3x3.3} parent=5 // pred_region
      // Predicated region
      $region33: #{sep_conv_3x3.3} parent=31 // pred_check
        %p201 = pneg %p33
      $region34: #{sep_conv_3x3.3} parent=31 // pred_check_branch
        %203 = sbr.rel (%p201) target = $region36
      $region35: #{sep_conv_3x3.3} parent=31 // pred_region
        %p204 = scmp.lt.s32.totalorder %s13, 1
        %s205 = scalar_select %p204, %s13, 1
        %s206 = smul.addr %s205, 2
        %s207 = smul.addr %s206, 4
        %s208 = scalar_lea.vmem %s0, %s207
      $region36: #{sep_conv_3x3.3} parent=31 // pred_fallthru
        _
    $region32: #{sep_conv_3x3.3} parent=5 // pred_fallthru
      _
    %p209 = scmp.le.s32.totalorder 1, %s13
    %p210 = scmp.lt.s32.totalorder %s13, 3
    %p211 = pnand %p209, %p210
    %p212 = pneg %p211
    // Predicated region
    $region37: #{sep_conv_3x3.3} parent=5 // pred_check
      _
    $region38: #{sep_conv_3x3.3} parent=5 // pred_check_branch
      %214 = sbr.rel (%p211) target = $region40
    $region39: #{sep_conv_3x3.3} parent=5 // pred_region
      %s215 = ssub.s32 %s13, 1
      %p216 = scmp.lt.s32.totalorder %s18, 1
      %s217 = scalar_select %p216, %s18, 1
      %s218 = smul.addr %s217, 2
      %s219 = smul.addr %s218, 4
      %s220 = scalar_lea.vmem %s0, %s219
      %p221 = pneg %p39
      %p222 = pneg %p36
      %p223 = pneg %p60
      %p224 = pneg %p57
      %p225 = pneg %p81
      %p226 = pneg %p78
      %p227 = pneg %p102
      %p228 = pneg %p99
      %p229 = pneg %p123
      %p230 = pneg %p120
      %p231 = pneg %p149
      %p232 = pneg %p146
      %p233 = scmp.lt.s32.totalorder %s18, 1
      %s234 = scalar_select %p233, %s18, 1
      %s235 = smul.addr %s234, 2
      %s236 = smul.addr %s235, 2
      %s237 = scalar_lea.vmem %s5, %s236
      %p238 = pneg %p170
      %p239 = pneg %p167
      %p240 = scmp.lt.s32.totalorder %s18, 1
      %s241 = scalar_select %p240, %s18, 1
      %s242 = smul.addr %s241, 2
      %s243 = smul.addr %s242, 4
      %s244 = scalar_lea.vmem %s0, %s243
      %p245 = scmp.lt.s32.totalorder %s18, 1
      %s246 = scalar_select %p245, %s18, 1
      %s247 = smul.addr %s246, 2
      %s248 = smul.addr %s247, 2
      %s249 = scalar_lea.vmem %s5, %s248
      %p251 = scmp.eq.s32.totalorder %s18, 0
      // Predicated region
      $region41: #{sep_conv_3x3.3} parent=39 // pred_check
        %p252 = pneg %p251
      $region42: #{sep_conv_3x3.3} parent=39 // pred_check_branch
        %254 = sbr.rel (%p252) target = $region44
      $region43: #{sep_conv_3x3.3} parent=39 // pred_region
        %255 = vst [vmem:[#allocation2] sm:$0xf] 0.0
        %256 = vst [vmem:[#allocation2 + $0xc] sm:$0xf] 0.0
      $region44: #{sep_conv_3x3.3} parent=39 // pred_fallthru
        _
      %v257 = vld [vmem:[%s244] sm:$0xff]
      %v258 = vld [vmem:[%s1] sm:$0xf]
      %260 = vset.pattern.permute.xlu0 0
      %261 = vperm.xlu0 %260, %v258
      %v262 = vpop.permute.xlu0 %261
      %v264 = vunpack.c.l.s4 839922192
      %v265 = vunpack.c.0.s8 %v264
      %v266 = vlaneseq
      %v267 = vshrl.u32 %v266, 7
      %v268 = vsub.s32 %v265, %v267
      %v269 = vrot.slane %v262, %v268
      %v271 = vsub.f32 %v257, %v269
      %v272 = vld [vmem:[%s2] sm:$0xf]
      %274 = vset.pattern.permute.xlu0 0
      %275 = vperm.xlu0 %274, %v272
      %v276 = vpop.permute.xlu0 %275
      %v278 = vunpack.c.l.s4 839922192
      %v279 = vunpack.c.0.s8 %v278
      %v280 = vlaneseq
      %v281 = vshrl.u32 %v280, 7
      %v282 = vsub.s32 %v279, %v281
      %v283 = vrot.slane %v276, %v282
      %v285 = vmul.f32 %v271, %v283
      %v286 = vmax.f32 %v285, 0.0
      %287 = vst [vmem:[#allocation2 + $0x4] sm:$0xff] %v286
      %v288 = vlaneseq
      %v289 = vand.u32 %v288, 127
      %v290 = vadd.s32 %v289, 128
      %vm291 = vcmp.lt.s32.totalorder %v289, 0
      %v292 = vsub.s32 0, %v289
      %v293 = vsel %vm291, %v292, %v289
      %v294 = vshrl.u32 %v293, 4
      %v295 = vand.u32 %v293, 15
      %v296 = vsub.s32 0, %v295
      %v297 = vsel %vm291, %v296, %v295
      %vm298 = vcmp.lt.s32.totalorder %v290, 0
      %v299 = vsub.s32 0, %v290
      %v300 = vsel %vm298, %v299, %v290
      %v301 = vshrl.u32 %v300, 4
      %v302 = vand.u32 %v300, 15
      %v303 = vsub.s32 0, %v302
      %v304 = vsel %vm298, %v303, %v302
      %vm305 = vcmp.ne.s32.totalorder %v297, 0
      %vm306 = vcmp.ne.s32.totalorder %v304, 0
      %vm307 = vcmp.lt.s32.totalorder %v297, 0
      %vm308 = vcmp.lt.s32.totalorder %v304, 0
      %vm309 = vmand %vm307, %vm305
      %vm310 = vmand %vm308, %vm306
      %v311 = vadd.s32 %v297, 16
      %v312 = vadd.s32 %v304, 16
      %v313 = vsel %vm309, %v311, %v297
      %v314 = vsel %vm310, %v312, %v304
      %vm315 = vcmp.ge.s32.totalorder %v313, 1
      %vm316 = vcmp.ge.s32.totalorder %v314, 1
      %v317 = vsel %vm315, 1, 0
      %v318 = vsel %vm316, 1, 0
      %v319 = vcvt.s32.f32 %v317
      %v320 = vcvt.s32.f32 %v318
      %vm321 = vcmp.le.s32.totalorder %v313, 14
      %vm322 = vcmp.le.s32.totalorder %v314, 14
      %v323 = vsel %vm321, 1, 0
      %v324 = vsel %vm322, 1, 0
      %v325 = vcvt.s32.f32 %v323
      %v326 = vcvt.s32.f32 %v324
      %v327 = vld [vmem:[%s3] sm:$0xf]
      %v328 = vld [vmem:[#allocation2] sm:$0xff]
      %v329 = vld [vmem:[#allocation2 + $0x8] sm:$0xf]
      %331 = vset.pattern.permute.xlu0 0
      %332 = vperm.xlu0 %331, %v327
      %v333 = vpop.permute.xlu0 %332
      %v335 = vmul.f32 %v333, %v319
      %v336 = vmul.f32 %v333, %v320
      %v339 = vcombine.low %v335, %v336
      %340 = vrot.lane.b32.xlu0 %v339, 111
      %v341 = vpop.permute.xlu0 %340
      %v342 = vrot.slane %v341, 4
      %vm343 = vcmask 908288
      %v344 = vsel %vm343, %v342, %v341
      %v347 = vmul.f32 %v328, %v344
      %v348 = vmul.f32 %v329, %v342
      %v349 = vadd.f32 %v347, 0.0
      %v350 = vadd.f32 %v348, 0.0
      %v351 = vld [vmem:[#allocation2] sm:$0xff]
      %v352 = vld [vmem:[#allocation2 + $0x8] sm:$0xf]
      %353 = vset.pattern.permute.xlu0 1
      %354 = vperm.xlu0 %353, %v327
      %v355 = vpop.permute.xlu0 %354
      %v357 = vunpack.c.l.s4 839922192
      %v358 = vunpack.c.0.s8 %v357
      %v359 = vlaneseq
      %v360 = vshrl.u32 %v359, 7
      %v361 = vsub.s32 %v358, %v360
      %v362 = vrot.slane %v355, %v361
      %v364 = vmul.f32 %v351, %v362
      %v365 = vmul.f32 %v352, %v362
      %368 = vrot.lane.b32.xlu0 %v364, 127
      %v369 = vpop.permute.xlu0 %368
      %370 = vrot.lane.b32.xlu0 %v365, 127
      %v371 = vpop.permute.xlu0 %370
      %v372 = vrot.slane %v369, 4
      %v373 = vrot.slane %v371, 4
      %vm374 = vcmask 1043456
      %v375 = vsel %vm374, %v372, %v373
      %vm376 = vcmask 1039360
      %v377 = vsel %vm376, %v369, %v375
      %v380 = vadd.f32 %v349, %v377
      %v381 = vadd.f32 %v350, %v371
      %382 = vset.pattern.permute.xlu0 2
      %383 = vperm.xlu0 %382, %v327
      %v384 = vpop.permute.xlu0 %383
      %v386 = vmul.f32 %v384, %v325
      %v387 = vmul.f32 %v384, %v326
      %v390 = vcombine.low %v386, %v387
      %391 = vrot.lane.b32.xlu0 %v390, 113
      %v392 = vpop.permute.xlu0 %391
      %v393 = vrot.slane %v392, 4
      %vm394 = vcmask 924672
      %v395 = vsel %vm394, %v393, %v392
      %v398 = vmul.f32 %v351, %v395
      %v399 = vmul.f32 %v352, %v393
      %402 = vrot.lane.b32.xlu0 %v398, 126
      %v403 = vpop.permute.xlu0 %402
      %404 = vrot.lane.b32.xlu0 %v399, 126
      %v405 = vpop.permute.xlu0 %404
      %v406 = vrot.slane %v403, 4
      %v407 = vrot.slane %v405, 4
      %v408 = vsel %vm374, %v406, %v407
      %vm409 = vcmask 1031168
      %v410 = vsel %vm409, %v403, %v408
      %v413 = vadd.f32 %v380, %v410
      %v414 = vadd.f32 %v381, %v405
      %v415 = vld [vmem:[#allocation2] sm:$0xff]
      %v416 = vld [vmem:[#allocation2 + $0x8] sm:$0xf]
      %417 = vset.pattern.permute.xlu0 3
      %418 = vperm.xlu0 %417, %v327
      %v419 = vpop.permute.xlu0 %418
      %v421 = vmul.f32 %v419, %v319
      %v422 = vmul.f32 %v419, %v320
      %v425 = vcombine.low %v421, %v422
      %426 = vrot.lane.b32.xlu0 %v425, 127
      %v427 = vpop.permute.xlu0 %426
      %v428 = vrot.slane %v427, 4
      %v429 = vsel %vm376, %v428, %v427
      %v432 = vmul.f32 %v415, %v429
      %v433 = vmul.f32 %v416, %v428
      %436 = vrot.lane.b32.xlu0 %v432, 112
      %v437 = vpop.permute.xlu0 %436
      %438 = vrot.lane.b32.xlu0 %v433, 112
      %v439 = vpop.permute.xlu0 %438
      %v440 = vrot.slane %v437, 4
      %v441 = vrot.slane %v439, 4
      %v442 = vsel %vm374, %v440, %v441
      %vm443 = vcmask 916480
      %v444 = vsel %vm443, %v437, %v442
      %v447 = vadd.f32 %v413, %v444
      %v448 = vadd.f32 %v414, %v439
      %v449 = vld [vmem:[#allocation2 + $0x4] sm:$0xff]
      %450 = vset.pattern.permute.xlu0 4
      %451 = vperm.xlu0 %450, %v327
      %v452 = vpop.permute.xlu0 %451
      %v454 = vunpack.c.l.s4 839922192
      %v455 = vunpack.c.0.s8 %v454
      %v456 = vlaneseq
      %v457 = vshrl.u32 %v456, 7
      %v458 = vsub.s32 %v455, %v457
      %v459 = vrot.slane %v452, %v458
      %v461 = vmul.f32 %v449, %v459
      %463 = vrot.lane.b32.xlu0 %v461, 111
      %v464 = vpop.permute.xlu0 %463
      %v465 = vrot.slane %v464, 4
      %v466 = vsel %vm343, %v465, %v464
      %v469 = vadd.f32 %v447, %v466
      %v470 = vadd.f32 %v448, %v465
      %v471 = vld [vmem:[#allocation2 + $0x4] sm:$0xff]
      %v472 = vld [vmem:[#allocation2 + $0xc] sm:$0xf]
      %473 = vset.pattern.permute.xlu0 5
      %474 = vperm.xlu0 %473, %v327
      %v475 = vpop.permute.xlu0 %474
      %v477 = vmul.f32 %v475, %v325
      %v478 = vmul.f32 %v475, %v326
      %v481 = vcombine.low %v477, %v478
      %482 = vrot.lane.b32.xlu0 %v481, 1
      %v483 = vpop.permute.xlu0 %482
      %v484 = vrot.slane %v483, 4
      %vm485 = vcmask 7168
      %v486 = vsel %vm485, %v484, %v483
      %v489 = vmul.f32 %v471, %v486
      %v490 = vmul.f32 %v472, %v484
      %493 = vrot.lane.b32.xlu0 %v489, 110
      %v494 = vpop.permute.xlu0 %493
      %495 = vrot.lane.b32.xlu0 %v490, 110
      %v496 = vpop.permute.xlu0 %495
      %v497 = vrot.slane %v494, 4
      %vm498 = vcmask 900096
      %v499 = vsel %vm498, %v497, %v494
      %v500 = vsel %vm498, %v497, %v496
      %v503 = vadd.f32 %v469, %v499
      %v504 = vadd.f32 %v470, %v500
      %v505 = vld [vmem:[#allocation2 + $0x4] sm:$0xff]
      %v506 = vld [vmem:[#allocation2 + $0xc] sm:$0xf]
      %507 = vset.pattern.permute.xlu0 6
      %508 = vperm.xlu0 %507, %v327
      %v509 = vpop.permute.xlu0 %508
      %v511 = vmul.f32 %v509, %v319
      %v512 = vmul.f32 %v509, %v320
      %v515 = vcombine.low %v511, %v512
      %516 = vrot.lane.b32.xlu0 %v515, 15
      %v517 = vpop.permute.xlu0 %516
      %v518 = vrot.slane %v517, 4
      %vm519 = vcmask 121856
      %v520 = vsel %vm519, %v518, %v517
      %v523 = vmul.f32 %v505, %v520
      %v524 = vmul.f32 %v506, %v518
      %527 = vrot.lane.b32.xlu0 %v523, 96
      %v528 = vpop.permute.xlu0 %527
      %529 = vrot.lane.b32.xlu0 %v524, 96
      %v530 = vpop.permute.xlu0 %529
      %v531 = vrot.slane %v528, 4
      %vm532 = vcmask 785408
      %v533 = vsel %vm532, %v531, %v528
      %v534 = vsel %vm532, %v531, %v530
      %v537 = vadd.f32 %v503, %v533
      %v538 = vadd.f32 %v504, %v534
      %v539 = vld [vmem:[#allocation2 + $0x4] sm:$0xff]
      %v540 = vld [vmem:[#allocation2 + $0xc] sm:$0xf]
      %541 = vset.pattern.permute.xlu0 7
      %542 = vperm.xlu0 %541, %v327
      %v543 = vpop.permute.xlu0 %542
      %v545 = vunpack.c.l.s4 839922192
      %v546 = vunpack.c.0.s8 %v545
      %v547 = vlaneseq
      %v548 = vshrl.u32 %v547, 7
      %v549 = vsub.s32 %v546, %v548
      %v550 = vrot.slane %v543, %v549
      %v552 = vmul.f32 %v539, %v550
      %v553 = vmul.f32 %v540, %v550
      %556 = vrot.lane.b32.xlu0 %v552, 95
      %v557 = vpop.permute.xlu0 %556
      %558 = vrot.lane.b32.xlu0 %v553, 95
      %v559 = vpop.permute.xlu0 %558
      %v560 = vrot.slane %v557, 4
      %vm561 = vcmask 777216
      %v562 = vsel %vm561, %v560, %v557
      %v563 = vsel %vm561, %v560, %v559
      %v566 = vadd.f32 %v537, %v562
      %v567 = vadd.f32 %v538, %v563
      %568 = vset.pattern.permute.xlu0 8
      %569 = vperm.xlu0 %568, %v327
      %v570 = vpop.permute.xlu0 %569
      %v572 = vmul.f32 %v570, %v325
      %v573 = vmul.f32 %v570, %v326
      %v576 = vcombine.low %v572, %v573
      %577 = vrot.lane.b32.xlu0 %v576, 17
      %v578 = vpop.permute.xlu0 %577
      %v579 = vrot.slane %v578, 4
      %vm580 = vcmask 138240
      %v581 = vsel %vm580, %v579, %v578
      %v584 = vmul.f32 %v539, %v581
      %v585 = vmul.f32 %v540, %v579
      %588 = vrot.lane.b32.xlu0 %v584, 94
      %v589 = vpop.permute.xlu0 %588
      %590 = vrot.lane.b32.xlu0 %v585, 94
      %v591 = vpop.permute.xlu0 %590
      %v592 = vrot.slane %v589, 4
      %vm593 = vcmask 769024
      %v594 = vsel %vm593, %v592, %v589
      %v595 = vsel %vm593, %v592, %v591
      %v598 = vadd.f32 %v566, %v594
      %v599 = vadd.f32 %v567, %v595
      %v600 = vld [vmem:[%s4] sm:$0x3]
      %v602 = vcombine.high %v598, %v598
      %v604 = vpack.c.bf16 %v598, %v598
      %v605 = vpack.c.bf16 %v602, %v602
      %v606 = vpack.c.bf16 %v599, %v599
      %610 = vrot.lane.b32.xlu0 %v604, 17
      %v611 = vpop.permute.xlu0 %610
      %612 = vrot.lane.b32.xlu0 %v605, 17
      %v613 = vpop.permute.xlu0 %612
      %614 = vrot.lane.b32.xlu0 %v606, 17
      %v615 = vpop.permute.xlu0 %614
      %vm616 = vcmask 138240
      %v617 = vsel %vm616, %v611, %v613
      %v618 = vsel %vm616, %v613, %v615
      %vm619 = vcmask 31744
      %v621 = vsel %vm619, %v600, 0
      %vm623 = vcmask 1041408
      %v625 = vsel %vm623, %v617, 0
      %v628 = vsel %vm623, %v618, 0
      %630 = vmatprep.subr.bf16.mxu0 %v628
      %631 = vmatpush1.bf16.msra.mxu0 %v625
      %632 = vmatprep.subr.bf16.mxu0 0
      %633 = vmatpush1.bf16.msra.mxu0 0
      %634 = vmatprep.subr.bf16.mxu0 0
      %635 = vmatpush1.bf16.msra.mxu0 0
      %636 = vmatprep.subr.bf16.mxu0 0
      %637 = vmatpush1.bf16.msra.mxu0 0
      %638 = vmatprep.subr.bf16.mxu0 0
      %639 = vmatpush1.bf16.msra.mxu0 0
      %640 = vmatprep.subr.bf16.mxu0 0
      %641 = vmatpush1.bf16.msra.mxu0 0
      %642 = vmatprep.subr.bf16.mxu0 0
      %643 = vmatpush1.bf16.msra.mxu0 0
      %644 = vmatprep.subr.bf16.mxu0 0
      %645 = vmatpush1.bf16.msra.mxu0 0
      %646 = vmatprep.subr.bf16.mxu0 0
      %647 = vmatpush1.bf16.msra.mxu0 0
      %648 = vmatprep.subr.bf16.mxu0 0
      %649 = vmatpush1.bf16.msra.mxu0 0
      %650 = vmatprep.subr.bf16.mxu0 0
      %651 = vmatpush1.bf16.msra.mxu0 0
      %652 = vmatprep.subr.bf16.mxu0 0
      %653 = vmatpush1.bf16.msra.mxu0 0
      %654 = vmatprep.subr.bf16.mxu0 0
      %655 = vmatpush1.bf16.msra.mxu0 0
      %656 = vmatprep.subr.bf16.mxu0 0
      %657 = vmatpush1.bf16.msra.mxu0 0
      %658 = vmatprep.subr.bf16.mxu0 0
      %659 = vmatpush1.bf16.msra.mxu0 0
      %660 = vmatprep.subr.bf16.mxu0 0
      %661 = vmatpush1.bf16.msra.mxu0 0
      %662 = vmatprep.mubr.bf16.mxu0 0
      %663 = vmatmul.mubr.bf16.gmra.mrb[0].mxu0 %v621
      %v664 = vpop.f32.mrb[0].mxu0
      %v665 = vadd.f32 0.0, %v664
      %v666 = vpop.f32.mrb[0].mxu0
      %v667 = vadd.f32 0.0, %v666
      %v668 = vpop.f32.mrb[0].mxu0
      %v669 = vpop.f32.mrb[0].mxu0
      %670 = vdwg.mxu0
      %v671 = vpack.c.bf16 %v665, %v665
      %v672 = vpack.c.bf16 %v667, %v667
      %v675 = vcombine.low %v671, %v672
      %v677 = vunpack.c.l.s4 1983009808
      %v678 = vunpack.c.0.s8 %v677
      %v679 = vlaneseq
      %v680 = vshrl.u32 %v679, 7
      %v681 = vsub.s32 %v678, %v680
      %v682 = vrot.slane %v675, %v681
      %684 = vst [vmem:[%s249] sm:$0xf] %v682
      %v685 = vunpack.c.l.bf16 %v671
      %v686 = vunpack.c.l.bf16 %v672
      %v687 = vsel %vm374, %v685, 0.0
      %v688 = vsel %vm374, %v686, 0.0
      %v689 = vadd.f32 %v687, %v688
      %690 = vadd.xlane.f32.xlu0 %v689
      %v691 = vpop.xlane.xlu0 %690
      %v692 = vmul.f32 %v685, %v685
      %v693 = vmul.f32 %v686, %v686
      %v694 = vsel %vm374, %v692, 0.0
      %v695 = vsel %vm374, %v693, 0.0
      %v696 = vadd.f32 %v694, %v695
      %697 = vadd.xlane.f32.xlu0 %v696
      %v698 = vpop.xlane.xlu0 %697
      // Predicated region
      $region45: #{sep_conv_3x3.3} parent=39 // pred_check
        %p699 = pneg %p251
      $region46: #{sep_conv_3x3.3} parent=39 // pred_check_branch
        %701 = sbr.rel (%p699) target = $region48
      $region47: #{sep_conv_3x3.3} parent=39 // pred_region
        %vm702 = vcmask 11264
        %703 = vst.msk [vmem:[%s6] sm:$0xf] %vm702, 0.0
      $region48: #{sep_conv_3x3.3} parent=39 // pred_fallthru
        _
      %v704 = vld [vmem:[%s6] sm:$0xf]
      %v705 = vsel %vm485, %v691, %v698
      %v706 = vadd.f32 %v704, %v705
      %vm707 = vcmask 11264
      %708 = vst.msk [vmem:[%s6] sm:$0xf] %vm707, %v706
      %p709 = scmp.lt.s32.totalorder %s18, 1
      %s710 = scalar_select %p709, %s18, 1
      %s711 = smul.addr %s710, 2
      %s712 = smul.addr %s711, 2
      %s713 = scalar_lea.vmem %s5, %s712
      // Predicated region
      $region49: #{sep_conv_3x3.3} parent=39 // pred_check
        %p714 = pneg %p146
      $region50: #{sep_conv_3x3.3} parent=39 // pred_check_branch
        %716 = sbr.rel (%p714) target = $region52
      $region51: #{sep_conv_3x3.3} parent=39 // pred_region
        _
      $region52: #{sep_conv_3x3.3} parent=39 // pred_fallthru
        _
      // Predicated region
      $region53: #{sep_conv_3x3.3} parent=39 // pred_check
        %p717 = pneg %p167
      $region54: #{sep_conv_3x3.3} parent=39 // pred_check_branch
        %719 = sbr.rel (%p717) target = $region56
      $region55: #{sep_conv_3x3.3} parent=39 // pred_region
        _
      $region56: #{sep_conv_3x3.3} parent=39 // pred_fallthru
        _
      // Predicated region
      $region57: #{sep_conv_3x3.3} parent=39 // pred_check
        %p720 = pneg %p167
      $region58: #{sep_conv_3x3.3} parent=39 // pred_check_branch
        %722 = sbr.rel (%p720) target = $region60
      $region59: #{sep_conv_3x3.3} parent=39 // pred_region
        _
      $region60: #{sep_conv_3x3.3} parent=39 // pred_fallthru
        _
    $region40: #{sep_conv_3x3.3} parent=5 // pred_fallthru
      _
    %p723 = scmp.le.s32.totalorder 2, %s13
    // Predicated region
    $region61: #{sep_conv_3x3.3} parent=5 // pred_check
      %p724 = pneg %p723
    $region62: #{sep_conv_3x3.3} parent=5 // pred_check_branch
      %726 = sbr.rel (%p724) target = $region64
    $region63: #{sep_conv_3x3.3} parent=5 // pred_region
      %s727 = ssub.s32 %s13, 2
      // Predicated region
      $region65: #{sep_conv_3x3.3} parent=63 // pred_check
        %p728 = pneg %p152
      $region66: #{sep_conv_3x3.3} parent=63 // pred_check_branch
        %730 = sbr.rel (%p728) target = $region68
      $region67: #{sep_conv_3x3.3} parent=63 // pred_region
        %p731 = scmp.lt.s32.totalorder %s19, 1
        %s732 = scalar_select %p731, %s19, 1
        %s733 = smul.addr %s732, 2
        %s734 = smul.addr %s733, 2
        %s735 = scalar_lea.vmem %s5, %s734
      $region68: #{sep_conv_3x3.3} parent=63 // pred_fallthru
        _
    $region64: #{sep_conv_3x3.3} parent=5 // pred_fallthru
      _
  $region6: #{sep_conv_3x3.3} parent=0 // loop_footer
    %s17 = sadd.s32 1, %s13
  $region7: #{sep_conv_3x3.3} parent=0 // loop_footer_branch
    %12 = sbr.rel target = $region3
  $region8: #{sep_conv_3x3.3} parent=0 // loop_exit
    _

// kernel: sep_conv_3x3.4
$region0: #{sep_conv_3x3.4}
  #allocation0 [shape = 'u32[]', space=smem, size = 0x4, offset = 0x4, fixed_abs, tag = 'smem constant byte address 0x4 - core index']
  #allocation1 [shape = 'u32[144,128]{1,0:T(1,128)}', space=vmem, size = 0x12000, scoped, tag = 'internal scratch']
  #allocation2 [shape = 'f32[4,512]{1,0:T(4,128)}', space=vmem, size = 0x2000, scoped, tag = 'scratch operand']
  %s0 = inlined_call_operand.vmem [shape: bf16[2,4,256], index: 0, kind: input, shape index: {}]
  %s1 = inlined_call_operand.vmem [shape: f32[4,1], index: 1, kind: input, shape index: {}]
  %s2 = inlined_call_operand.vmem [shape: f32[4,1], index: 2, kind: input, shape index: {}]
  %s3 = inlined_call_operand.vmem [shape: f32[4,9], index: 3, kind: input, shape index: {}]
  %s4 = inlined_call_operand.vmem [shape: bf16[4,4], index: 4, kind: input, shape index: {}]
  %s5 = inlined_call_operand.vmem [shape: bf16[2,4,256], index: 5, kind: output, shape index: {0}]
  %s6 = inlined_call_operand.vmem [shape: f32[4,2], index: 6, kind: output, shape index: {1}]
  %7 = xla_tuple %s5, %s6
  %s8 = sld [smem:[#allocation0]]
  $region69: #{sep_conv_3x3.4} parent=0
    _
  %s10 = ssub.s32 1, %s8
  %s11 = scalar_select 0, %s10, %s8
  loop: start=0, step=1, limit=4
  $region2: #{sep_conv_3x3.4} parent=0 // loop_pre_header
    _
  $region3: #{sep_conv_3x3.4} parent=0 // loop_header
    %s13 = sphi 0, %s17
    %p14 = scmp.ge.s32.totalorder %s13, 4
    %s23 = sphi 0, %s25
    %s26 = sphi 0, %s23
    %s27 = sphi 0, %s26
    %s43 = sphi 0, %s27
    %s47 = sphi 0, %s47
    %s49 = sphi 0, %s47
    %s50 = sphi 0, %s49
    %s64 = sphi 0, %s50
    %s68 = sphi 0, %s68
    %s70 = sphi 0, %s68
    %s71 = sphi 0, %s70
    %s85 = sphi 0, %s71
    %s89 = sphi 0, %s89
    %s91 = sphi 0, %s89
    %s92 = sphi 0, %s91
    %s106 = sphi 0, %s92
    %s110 = sphi 0, %s110
    %s112 = sphi 0, %s110
    %s113 = sphi 0, %s112
    %s127 = sphi 0, %s113
    %s133 = sphi 0, %s135
    %s136 = sphi 0, %s133
    %s137 = sphi 0, %s136
    %s153 = sphi 0, %s137
    %s157 = sphi 0, %s157
    %s159 = sphi 0, %s157
    %s160 = sphi 0, %s159
    %s174 = sphi 0, %s160
  $region4: #{sep_conv_3x3.4} parent=0 // loop_header_branch
    %16 = sbr.rel (%p14) target = $region8
  $region5: #{sep_conv_3x3.4} parent=0 // loop_body
    %s18 = ssub.s32 %s13, 1
    %s19 = ssub.s32 %s13, 2
    %s20 = sadd.s32 %s13, 1
    %s21 = ssub.s32 %s13, %s20
    %p22 = scmp.eq.s32.totalorder %s21, 0
    %s24 = sadd.s32 %s23, 1
    %s25 = scalar_select %p22, %s23, %s24
    %p28 = pneg %p22
    %p29 = scmp.eq.s32.totalorder %s13, 1
    %p30 = por %p28, %p29
    %p31 = scmp.ne.s32.totalorder %s23, %s26
    %p32 = scmp.eq.s32.totalorder %s13, 0
    %p33 = por %p31, %p32
    %p34 = scmp.ne.s32.totalorder %s23, %s26
    %p35 = scmp.eq.s32.totalorder %s18, 1
    %p36 = por %p34, %p35
    %p37 = scmp.ne.s32.totalorder %s26, %s27
    %p38 = scmp.eq.s32.totalorder %s18, 0
    %p39 = por %p37, %p38
    %p40 = scmp.ne.s32.totalorder %s26, %s27
    %p41 = scmp.eq.s32.totalorder %s19, 1
    %p42 = por %p40, %p41
    %p44 = scmp.ne.s32.totalorder %s27, %s43
    %p45 = scmp.eq.s32.totalorder %s19, 0
    %p46 = por %p44, %p45
    %s48 = sadd.s32 %s47, 1
    %p51 = scmp.eq.s32.totalorder %s13, 1
    %p52 = scmp.ne.s32.totalorder %s47, %s49
    %p53 = scmp.eq.s32.totalorder %s13, 0
    %p54 = por %p52, %p53
    %p55 = scmp.ne.s32.totalorder %s47, %s49
    %p56 = scmp.eq.s32.totalorder %s18, 1
    %p57 = por %p55, %p56
    %p58 = scmp.ne.s32.totalorder %s49, %s50
    %p59 = scmp.eq.s32.totalorder %s18, 0
    %p60 = por %p58, %p59
    %p61 = scmp.ne.s32.totalorder %s49, %s50
    %p62 = scmp.eq.s32.totalorder %s19, 1
    %p63 = por %p61, %p62
    %p65 = scmp.ne.s32.totalorder %s50, %s64
    %p66 = scmp.eq.s32.totalorder %s19, 0
    %p67 = por %p65, %p66
    %s69 = sadd.s32 %s68, 1
    %p72 = scmp.eq.s32.totalorder %s13, 1
    %p73 = scmp.ne.s32.totalorder %s68, %s70
    %p74 = scmp.eq.s32.totalorder %s13, 0
    %p75 = por %p73, %p74
    %p76 = scmp.ne.s32.totalorder %s68, %s70
    %p77 = scmp.eq.s32.totalorder %s18, 1
    %p78 = por %p76, %p77
    %p79 = scmp.ne.s32.totalorder %s70, %s71
    %p80 = scmp.eq.s32.totalorder %s18, 0
    %p81 = por %p79, %p80
    %p82 = scmp.ne.s32.totalorder %s70, %s71
    %p83 = scmp.eq.s32.totalorder %s19, 1
    %p84 = por %p82, %p83
    %p86 = scmp.ne.s32.totalorder %s71, %s85
    %p87 = scmp.eq.s32.totalorder %s19, 0
    %p88 = por %p86, %p87
    %s90 = sadd.s32 %s89, 1
    %p93 = scmp.eq.s32.totalorder %s13, 1
    %p94 = scmp.ne.s32.totalorder %s89, %s91
    %p95 = scmp.eq.s32.totalorder %s13, 0
    %p96 = por %p94, %p95
    %p97 = scmp.ne.s32.totalorder %s89, %s91
    %p98 = scmp.eq.s32.totalorder %s18, 1
    %p99 = por %p97, %p98
    %p100 = scmp.ne.s32.totalorder %s91, %s92
    %p101 = scmp.eq.s32.totalorder %s18, 0
    %p102 = por %p100, %p101
    %p103 = scmp.ne.s32.totalorder %s91, %s92
    %p104 = scmp.eq.s32.totalorder %s19, 1
    %p105 = por %p103, %p104
    %p107 = scmp.ne.s32.totalorder %s92, %s106
    %p108 = scmp.eq.s32.totalorder %s19, 0
    %p109 = por %p107, %p108
    %s111 = sadd.s32 %s110, 1
    %p114 = scmp.eq.s32.totalorder %s13, 1
    %p115 = scmp.ne.s32.totalorder %s110, %s112
    %p116 = scmp.eq.s32.totalorder %s13, 0
    %p117 = por %p115, %p116
    %p118 = scmp.ne.s32.totalorder %s110, %s112
    %p119 = scmp.eq.s32.totalorder %s18, 1
    %p120 = por %p118, %p119
    %p121 = scmp.ne.s32.totalorder %s112, %s113
    %p122 = scmp.eq.s32.totalorder %s18, 0
    %p123 = por %p121, %p122
    %p124 = scmp.ne.s32.totalorder %s112, %s113
    %p125 = scmp.eq.s32.totalorder %s19, 1
    %p126 = por %p124, %p125
    %p128 = scmp.ne.s32.totalorder %s113, %s127
    %p129 = scmp.eq.s32.totalorder %s19, 0
    %p130 = por %p128, %p129
    %s131 = ssub.s32 %s13, %s20
    %p132 = scmp.eq.s32.totalorder %s131, 0
    %s134 = sadd.s32 %s133, 1
    %s135 = scalar_select %p132, %s133, %s134
    %p138 = pneg %p132
    %p139 = scmp.eq.s32.totalorder %s13, 1
    %p140 = por %p138, %p139
    %p141 = scmp.ne.s32.totalorder %s133, %s136
    %p142 = scmp.eq.s32.totalorder %s13, 0
    %p143 = por %p141, %p142
    %p144 = scmp.ne.s32.totalorder %s133, %s136
    %p145 = scmp.eq.s32.totalorder %s18, 1
    %p146 = por %p144, %p145
    %p147 = scmp.ne.s32.totalorder %s136, %s137
    %p148 = scmp.eq.s32.totalorder %s18, 0
    %p149 = por %p147, %p148
    %p150 = scmp.ne.s32.totalorder %s136, %s137
    %p151 = scmp.eq.s32.totalorder %s19, 1
    %p152 = por %p150, %p151
    %p154 = scmp.ne.s32.totalorder %s137, %s153
    %p155 = scmp.eq.s32.totalorder %s19, 0
    %p156 = por %p154, %p155
    %s158 = sadd.s32 %s157, 1
    %p161 = scmp.eq.s32.totalorder %s13, 1
    %p162 = scmp.ne.s32.totalorder %s157, %s159
    %p163 = scmp.eq.s32.totalorder %s13, 0
    %p164 = por %p162, %p163
    %p165 = scmp.ne.s32.totalorder %s157, %s159
    %p166 = scmp.eq.s32.totalorder %s18, 1
    %p167 = por %p165, %p166
    %p168 = scmp.ne.s32.totalorder %s159, %s160
    %p169 = scmp.eq.s32.totalorder %s18, 0
    %p170 = por %p168, %p169
    %p171 = scmp.ne.s32.totalorder %s159, %s160
    %p172 = scmp.eq.s32.totalorder %s19, 1
    %p173 = por %p171, %p172
    %p175 = scmp.ne.s32.totalorder %s160, %s174
    %p176 = scmp.eq.s32.totalorder %s19, 0
    %p177 = por %p175, %p176
    %p178 = scmp.le.s32.totalorder 1, %s13
    %p179 = scmp.lt.s32.totalorder %s13, 3
    %p180 = pnand %p178, %p179
    %p181 = pneg %p180
    // Predicated region
    $region9: #{sep_conv_3x3.4} parent=5 // pred_check
      _
    $region10: #{sep_conv_3x3.4} parent=5 // pred_check_branch
      %183 = sbr.rel (%p180) target = $region12
    $region11: #{sep_conv_3x3.4} parent=5 // pred_region
      %s184 = ssub.s32 %s13, 1
      // Predicated region
      $region13: #{sep_conv_3x3.4} parent=11 // pred_check
        %p185 = pneg %p60
      $region14: #{sep_conv_3x3.4} parent=11 // pred_check_branch
        %187 = sbr.rel (%p185) target = $region16
      $region15: #{sep_conv_3x3.4} parent=11 // pred_region
        _
      $region16: #{sep_conv_3x3.4} parent=11 // pred_fallthru
        _
      // Predicated region
      $region17: #{sep_conv_3x3.4} parent=11 // pred_check
        %p188 = pneg %p81
      $region18: #{sep_conv_3x3.4} parent=11 // pred_check_branch
        %190 = sbr.rel (%p188) target = $region20
      $region19: #{sep_conv_3x3.4} parent=11 // pred_region
        _
      $region20: #{sep_conv_3x3.4} parent=11 // pred_fallthru
        _
      // Predicated region
      $region21: #{sep_conv_3x3.4} parent=11 // pred_check
        %p191 = pneg %p102
      $region22: #{sep_conv_3x3.4} parent=11 // pred_check_branch
        %193 = sbr.rel (%p191) target = $region24
      $region23: #{sep_conv_3x3.4} parent=11 // pred_region
        _
      $region24: #{sep_conv_3x3.4} parent=11 // pred_fallthru
        _
      // Predicated region
      $region25: #{sep_conv_3x3.4} parent=11 // pred_check
        %p194 = pneg %p123
      $region26: #{sep_conv_3x3.4} parent=11 // pred_check_branch
        %196 = sbr.rel (%p194) target = $region28
      $region27: #{sep_conv_3x3.4} parent=11 // pred_region
        _
      $region28: #{sep_conv_3x3.4} parent=11 // pred_fallthru
        _
    $region12: #{sep_conv_3x3.4} parent=5 // pred_fallthru
      _
    %p197 = scmp.lt.s32.totalorder %s13, 2
    // Predicated region
    $region29: #{sep_conv_3x3.4} parent=5 // pred_check
      %p198 = pneg %p197
    $region30: #{sep_conv_3x3.4} parent=5 // pred_check_branch
      %200 = sbr.rel (%p198) target = $region32
    $region31: #{sep_conv_3x3.4} parent=5 // pred_region
      // Predicated region
      $region33: #{sep_conv_3x3.4} parent=31 // pred_check
        %p201 = pneg %p33
      $region34: #{sep_conv_3x3.4} parent=31 // pred_check_branch
        %203 = sbr.rel (%p201) target = $region36
      $region35: #{sep_conv_3x3.4} parent=31 // pred_region
        %p204 = scmp.lt.s32.totalorder %s13, 1
        %s205 = scalar_select %p204, %s13, 1
        %s206 = smul.addr %s205, 2
        %s207 = smul.addr %s206, 2
        %s208 = scalar_lea.vmem %s0, %s207
      $region36: #{sep_conv_3x3.4} parent=31 // pred_fallthru
        _
    $region32: #{sep_conv_3x3.4} parent=5 // pred_fallthru
      _
    %p209 = scmp.le.s32.totalorder 1, %s13
    %p210 = scmp.lt.s32.totalorder %s13, 3
    %p211 = pnand %p209, %p210
    %p212 = pneg %p211
    // Predicated region
    $region37: #{sep_conv_3x3.4} parent=5 // pred_check
      _
    $region38: #{sep_conv_3x3.4} parent=5 // pred_check_branch
      %214 = sbr.rel (%p211) target = $region40
    $region39: #{sep_conv_3x3.4} parent=5 // pred_region
      %s215 = ssub.s32 %s13, 1
      %p216 = scmp.lt.s32.totalorder %s18, 1
      %s217 = scalar_select %p216, %s18, 1
      %s218 = smul.addr %s217, 2
      %s219 = smul.addr %s218, 2
      %s220 = scalar_lea.vmem %s0, %s219
      %p221 = pneg %p39
      %p222 = pneg %p36
      %p223 = pneg %p60
      %p224 = pneg %p57
      %p225 = pneg %p81
      %p226 = pneg %p78
      %p227 = pneg %p102
      %p228 = pneg %p99
      %p229 = pneg %p123
      %p230 = pneg %p120
      %p231 = pneg %p149
      %p232 = pneg %p146
      %p233 = scmp.lt.s32.totalorder %s18, 1
      %s234 = scalar_select %p233, %s18, 1
      %s235 = smul.addr %s234, 2
      %s236 = smul.addr %s235, 2
      %s237 = scalar_lea.vmem %s5, %s236
      %p238 = pneg %p170
      %p239 = pneg %p167
      %p240 = scmp.lt.s32.totalorder %s18, 1
      %s241 = scalar_select %p240, %s18, 1
      %s242 = smul.addr %s241, 2
      %s243 = smul.addr %s242, 2
      %s244 = scalar_lea.vmem %s0, %s243
      %p245 = scmp.lt.s32.totalorder %s18, 1
      %s246 = scalar_select %p245, %s18, 1
      %s247 = smul.addr %s246, 2
      %s248 = smul.addr %s247, 2
      %s249 = scalar_lea.vmem %s5, %s248
      %p251 = scmp.eq.s32.totalorder %s18, 0
      // Predicated region
      $region41: #{sep_conv_3x3.4} parent=39 // pred_check
        %p252 = pneg %p251
      $region42: #{sep_conv_3x3.4} parent=39 // pred_check_branch
        %254 = sbr.rel (%p252) target = $region44
      $region43: #{sep_conv_3x3.4} parent=39 // pred_region
        %255 = vst [vmem:[#allocation2] sm:$0xf] 0.0
        %256 = vst [vmem:[#allocation2 + $0xc] sm:$0xf] 0.0
      $region44: #{sep_conv_3x3.4} parent=39 // pred_fallthru
        _
      %v257 = vld [vmem:[%s244] sm:$0xf]
      %v258 = vunpack.c.l.bf16 %v257
      %v259 = vld [vmem:[%s1] sm:$0xf]
      %261 = vset.pattern.permute.xlu0 0
      %262 = vperm.xlu0 %261, %v259
      %v263 = vpop.permute.xlu0 %262
      %v265 = vunpack.c.l.s4 839922192
      %v266 = vunpack.c.0.s8 %v265
      %v267 = vlaneseq
      %v268 = vshrl.u32 %v267, 7
      %v269 = vsub.s32 %v266, %v268
      %v270 = vrot.slane %v263, %v269
      %v272 = vsub.f32 %v258, %v270
      %v273 = vld [vmem:[%s2] sm:$0xf]
      %275 = vset.pattern.permute.xlu0 0
      %276 = vperm.xlu0 %275, %v273
      %v277 = vpop.permute.xlu0 %276
      %v279 = vunpack.c.l.s4 839922192
      %v280 = vunpack.c.0.s8 %v279
      %v281 = vlaneseq
      %v282 = vshrl.u32 %v281, 7
      %v283 = vsub.s32 %v280, %v282
      %v284 = vrot.slane %v277, %v283
      %v286 = vmul.f32 %v272, %v284
      %v287 = vmax.f32 %v286, 0.0
      %288 = vst [vmem:[#allocation2 + $0x4] sm:$0xff] %v287
      %v289 = vlaneseq
      %v290 = vand.u32 %v289, 127
      %v291 = vadd.s32 %v290, 128
      %vm292 = vcmp.lt.s32.totalorder %v290, 0
      %v293 = vsub.s32 0, %v290
      %v294 = vsel %vm292, %v293, %v290
      %v295 = vshrl.u32 %v294, 4
      %v296 = vand.u32 %v294, 15
      %v297 = vsub.s32 0, %v296
      %v298 = vsel %vm292, %v297, %v296
      %vm299 = vcmp.lt.s32.totalorder %v291, 0
      %v300 = vsub.s32 0, %v291
      %v301 = vsel %vm299, %v300, %v291
      %v302 = vshrl.u32 %v301, 4
      %v303 = vand.u32 %v301, 15
      %v304 = vsub.s32 0, %v303
      %v305 = vsel %vm299, %v304, %v303
      %vm306 = vcmp.ne.s32.totalorder %v298, 0
      %vm307 = vcmp.ne.s32.totalorder %v305, 0
      %vm308 = vcmp.lt.s32.totalorder %v298, 0
      %vm309 = vcmp.lt.s32.totalorder %v305, 0
      %vm310 = vmand %vm308, %vm306
      %vm311 = vmand %vm309, %vm307
      %v312 = vadd.s32 %v298, 16
      %v313 = vadd.s32 %v305, 16
      %v314 = vsel %vm310, %v312, %v298
      %v315 = vsel %vm311, %v313, %v305
      %vm316 = vcmp.ge.s32.totalorder %v314, 1
      %vm317 = vcmp.ge.s32.totalorder %v315, 1
      %v318 = vsel %vm316, 1, 0
      %v319 = vsel %vm317, 1, 0
      %v320 = vcvt.s32.f32 %v318
      %v321 = vcvt.s32.f32 %v319
      %vm322 = vcmp.le.s32.totalorder %v314, 14
      %vm323 = vcmp.le.s32.totalorder %v315, 14
      %v324 = vsel %vm322, 1, 0
      %v325 = vsel %vm323, 1, 0
      %v326 = vcvt.s32.f32 %v324
      %v327 = vcvt.s32.f32 %v325
      %v328 = vld [vmem:[%s3] sm:$0xf]
      %v329 = vld [vmem:[#allocation2] sm:$0xff]
      %v330 = vld [vmem:[#allocation2 + $0x8] sm:$0xf]
      %332 = vset.pattern.permute.xlu0 0
      %333 = vperm.xlu0 %332, %v328
      %v334 = vpop.permute.xlu0 %333
      %v336 = vmul.f32 %v334, %v320
      %v337 = vmul.f32 %v334, %v321
      %v340 = vcombine.low %v336, %v337
      %341 = vrot.lane.b32.xlu0 %v340, 111
      %v342 = vpop.permute.xlu0 %341
      %v343 = vrot.slane %v342, 4
      %vm344 = vcmask 908288
      %v345 = vsel %vm344, %v343, %v342
      %v348 = vmul.f32 %v329, %v345
      %v349 = vmul.f32 %v330, %v343
      %v350 = vadd.f32 %v348, 0.0
      %v351 = vadd.f32 %v349, 0.0
      %v352 = vld [vmem:[#allocation2] sm:$0xff]
      %v353 = vld [vmem:[#allocation2 + $0x8] sm:$0xf]
      %354 = vset.pattern.permute.xlu0 1
      %355 = vperm.xlu0 %354, %v328
      %v356 = vpop.permute.xlu0 %355
      %v358 = vunpack.c.l.s4 839922192
      %v359 = vunpack.c.0.s8 %v358
      %v360 = vlaneseq
      %v361 = vshrl.u32 %v360, 7
      %v362 = vsub.s32 %v359, %v361
      %v363 = vrot.slane %v356, %v362
      %v365 = vmul.f32 %v352, %v363
      %v366 = vmul.f32 %v353, %v363
      %369 = vrot.lane.b32.xlu0 %v365, 127
      %v370 = vpop.permute.xlu0 %369
      %371 = vrot.lane.b32.xlu0 %v366, 127
      %v372 = vpop.permute.xlu0 %371
      %v373 = vrot.slane %v370, 4
      %v374 = vrot.slane %v372, 4
      %vm375 = vcmask 1043456
      %v376 = vsel %vm375, %v373, %v374
      %vm377 = vcmask 1039360
      %v378 = vsel %vm377, %v370, %v376
      %v381 = vadd.f32 %v350, %v378
      %v382 = vadd.f32 %v351, %v372
      %383 = vset.pattern.permute.xlu0 2
      %384 = vperm.xlu0 %383, %v328
      %v385 = vpop.permute.xlu0 %384
      %v387 = vmul.f32 %v385, %v326
      %v388 = vmul.f32 %v385, %v327
      %v391 = vcombine.low %v387, %v388
      %392 = vrot.lane.b32.xlu0 %v391, 113
      %v393 = vpop.permute.xlu0 %392
      %v394 = vrot.slane %v393, 4
      %vm395 = vcmask 924672
      %v396 = vsel %vm395, %v394, %v393
      %v399 = vmul.f32 %v352, %v396
      %v400 = vmul.f32 %v353, %v394
      %403 = vrot.lane.b32.xlu0 %v399, 126
      %v404 = vpop.permute.xlu0 %403
      %405 = vrot.lane.b32.xlu0 %v400, 126
      %v406 = vpop.permute.xlu0 %405
      %v407 = vrot.slane %v404, 4
      %v408 = vrot.slane %v406, 4
      %v409 = vsel %vm375, %v407, %v408
      %vm410 = vcmask 1031168
      %v411 = vsel %vm410, %v404, %v409
      %v414 = vadd.f32 %v381, %v411
      %v415 = vadd.f32 %v382, %v406
      %v416 = vld [vmem:[#allocation2] sm:$0xff]
      %v417 = vld [vmem:[#allocation2 + $0x8] sm:$0xf]
      %418 = vset.pattern.permute.xlu0 3
      %419 = vperm.xlu0 %418, %v328
      %v420 = vpop.permute.xlu0 %419
      %v422 = vmul.f32 %v420, %v320
      %v423 = vmul.f32 %v420, %v321
      %v426 = vcombine.low %v422, %v423
      %427 = vrot.lane.b32.xlu0 %v426, 127
      %v428 = vpop.permute.xlu0 %427
      %v429 = vrot.slane %v428, 4
      %v430 = vsel %vm377, %v429, %v428
      %v433 = vmul.f32 %v416, %v430
      %v434 = vmul.f32 %v417, %v429
      %437 = vrot.lane.b32.xlu0 %v433, 112
      %v438 = vpop.permute.xlu0 %437
      %439 = vrot.lane.b32.xlu0 %v434, 112
      %v440 = vpop.permute.xlu0 %439
      %v441 = vrot.slane %v438, 4
      %v442 = vrot.slane %v440, 4
      %v443 = vsel %vm375, %v441, %v442
      %vm444 = vcmask 916480
      %v445 = vsel %vm444, %v438, %v443
      %v448 = vadd.f32 %v414, %v445
      %v449 = vadd.f32 %v415, %v440
      %v450 = vld [vmem:[#allocation2 + $0x4] sm:$0xff]
      %451 = vset.pattern.permute.xlu0 4
      %452 = vperm.xlu0 %451, %v328
      %v453 = vpop.permute.xlu0 %452
      %v455 = vunpack.c.l.s4 839922192
      %v456 = vunpack.c.0.s8 %v455
      %v457 = vlaneseq
      %v458 = vshrl.u32 %v457, 7
      %v459 = vsub.s32 %v456, %v458
      %v460 = vrot.slane %v453, %v459
      %v462 = vmul.f32 %v450, %v460
      %464 = vrot.lane.b32.xlu0 %v462, 111
      %v465 = vpop.permute.xlu0 %464
      %v466 = vrot.slane %v465, 4
      %v467 = vsel %vm344, %v466, %v465
      %v470 = vadd.f32 %v448, %v467
      %v471 = vadd.f32 %v449, %v466
      %v472 = vld [vmem:[#allocation2 + $0x4] sm:$0xff]
      %v473 = vld [vmem:[#allocation2 + $0xc] sm:$0xf]
      %474 = vset.pattern.permute.xlu0 5
      %475 = vperm.xlu0 %474, %v328
      %v476 = vpop.permute.xlu0 %475
      %v478 = vmul.f32 %v476, %v326
      %v479 = vmul.f32 %v476, %v327
      %v482 = vcombine.low %v478, %v479
      %483 = vrot.lane.b32.xlu0 %v482, 1
      %v484 = vpop.permute.xlu0 %483
      %v485 = vrot.slane %v484, 4
      %vm486 = vcmask 7168
      %v487 = vsel %vm486, %v485, %v484
      %v490 = vmul.f32 %v472, %v487
      %v491 = vmul.f32 %v473, %v485
      %494 = vrot.lane.b32.xlu0 %v490, 110
      %v495 = vpop.permute.xlu0 %494
      %496 = vrot.lane.b32.xlu0 %v491, 110
      %v497 = vpop.permute.xlu0 %496
      %v498 = vrot.slane %v495, 4
      %vm499 = vcmask 900096
      %v500 = vsel %vm499, %v498, %v495
      %v501 = vsel %vm499, %v498, %v497
      %v504 = vadd.f32 %v470, %v500
      %v505 = vadd.f32 %v471, %v501
      %v506 = vld [vmem:[#allocation2 + $0x4] sm:$0xff]
      %v507 = vld [vmem:[#allocation2 + $0xc] sm:$0xf]
      %508 = vset.pattern.permute.xlu0 6
      %509 = vperm.xlu0 %508, %v328
      %v510 = vpop.permute.xlu0 %509
      %v512 = vmul.f32 %v510, %v320
      %v513 = vmul.f32 %v510, %v321
      %v516 = vcombine.low %v512, %v513
      %517 = vrot.lane.b32.xlu0 %v516, 15
      %v518 = vpop.permute.xlu0 %517
      %v519 = vrot.slane %v518, 4
      %vm520 = vcmask 121856
      %v521 = vsel %vm520, %v519, %v518
      %v524 = vmul.f32 %v506, %v521
      %v525 = vmul.f32 %v507, %v519
      %528 = vrot.lane.b32.xlu0 %v524, 96
      %v529 = vpop.permute.xlu0 %528
      %530 = vrot.lane.b32.xlu0 %v525, 96
      %v531 = vpop.permute.xlu0 %530
      %v532 = vrot.slane %v529, 4
      %vm533 = vcmask 785408
      %v534 = vsel %vm533, %v532, %v529
      %v535 = vsel %vm533, %v532, %v531
      %v538 = vadd.f32 %v504, %v534
      %v539 = vadd.f32 %v505, %v535
      %v540 = vld [vmem:[#allocation2 + $0x4] sm:$0xff]
      %v541 = vld [vmem:[#allocation2 + $0xc] sm:$0xf]
      %542 = vset.pattern.permute.xlu0 7
      %543 = vperm.xlu0 %542, %v328
      %v544 = vpop.permute.xlu0 %543
      %v546 = vunpack.c.l.s4 839922192
      %v547 = vunpack.c.0.s8 %v546
      %v548 = vlaneseq
      %v549 = vshrl.u32 %v548, 7
      %v550 = vsub.s32 %v547, %v549
      %v551 = vrot.slane %v544, %v550
      %v553 = vmul.f32 %v540, %v551
      %v554 = vmul.f32 %v541, %v551
      %557 = vrot.lane.b32.xlu0 %v553, 95
      %v558 = vpop.permute.xlu0 %557
      %559 = vrot.lane.b32.xlu0 %v554, 95
      %v560 = vpop.permute.xlu0 %559
      %v561 = vrot.slane %v558, 4
      %vm562 = vcmask 777216
      %v563 = vsel %vm562, %v561, %v558
      %v564 = vsel %vm562, %v561, %v560
      %v567 = vadd.f32 %v538, %v563
      %v568 = vadd.f32 %v539, %v564
      %569 = vset.pattern.permute.xlu0 8
      %570 = vperm.xlu0 %569, %v328
      %v571 = vpop.permute.xlu0 %570
      %v573 = vmul.f32 %v571, %v326
      %v574 = vmul.f32 %v571, %v327
      %v577 = vcombine.low %v573, %v574
      %578 = vrot.lane.b32.xlu0 %v577, 17
      %v579 = vpop.permute.xlu0 %578
      %v580 = vrot.slane %v579, 4
      %vm581 = vcmask 138240
      %v582 = vsel %vm581, %v580, %v579
      %v585 = vmul.f32 %v540, %v582
      %v586 = vmul.f32 %v541, %v580
      %589 = vrot.lane.b32.xlu0 %v585, 94
      %v590 = vpop.permute.xlu0 %589
      %591 = vrot.lane.b32.xlu0 %v586, 94
      %v592 = vpop.permute.xlu0 %591
      %v593 = vrot.slane %v590, 4
      %vm594 = vcmask 769024
      %v595 = vsel %vm594, %v593, %v590
      %v596 = vsel %vm594, %v593, %v592
      %v599 = vadd.f32 %v567, %v595
      %v600 = vadd.f32 %v568, %v596
      %v601 = vld [vmem:[%s4] sm:$0x3]
      %v603 = vcombine.high %v599, %v599
      %v605 = vpack.c.bf16 %v599, %v599
      %v606 = vpack.c.bf16 %v603, %v603
      %v607 = vpack.c.bf16 %v600, %v600
      %611 = vrot.lane.b32.xlu0 %v605, 17
      %v612 = vpop.permute.xlu0 %611
      %613 = vrot.lane.b32.xlu0 %v606, 17
      %v614 = vpop.permute.xlu0 %613
      %615 = vrot.lane.b32.xlu0 %v607, 17
      %v616 = vpop.permute.xlu0 %615
      %vm617 = vcmask 138240
      %v618 = vsel %vm617, %v612, %v614
      %v619 = vsel %vm617, %v614, %v616
      %vm620 = vcmask 31744
      %v622 = vsel %vm620, %v601, 0
      %vm624 = vcmask 1041408
      %v626 = vsel %vm624, %v618, 0
      %v629 = vsel %vm624, %v619, 0
      %631 = vmatprep.subr.bf16.mxu0 %v629
      %632 = vmatpush1.bf16.msra.mxu0 %v626
      %633 = vmatprep.subr.bf16.mxu0 0
      %634 = vmatpush1.bf16.msra.mxu0 0
      %635 = vmatprep.subr.bf16.mxu0 0
      %636 = vmatpush1.bf16.msra.mxu0 0
      %637 = vmatprep.subr.bf16.mxu0 0
      %638 = vmatpush1.bf16.msra.mxu0 0
      %639 = vmatprep.subr.bf16.mxu0 0
      %640 = vmatpush1.bf16.msra.mxu0 0
      %641 = vmatprep.subr.bf16.mxu0 0
      %642 = vmatpush1.bf16.msra.mxu0 0
      %643 = vmatprep.subr.bf16.mxu0 0
      %644 = vmatpush1.bf16.msra.mxu0 0
      %645 = vmatprep.subr.bf16.mxu0 0
      %646 = vmatpush1.bf16.msra.mxu0 0
      %647 = vmatprep.subr.bf16.mxu0 0
      %648 = vmatpush1.bf16.msra.mxu0 0
      %649 = vmatprep.subr.bf16.mxu0 0
      %650 = vmatpush1.bf16.msra.mxu0 0
      %651 = vmatprep.subr.bf16.mxu0 0
      %652 = vmatpush1.bf16.msra.mxu0 0
      %653 = vmatprep.subr.bf16.mxu0 0
      %654 = vmatpush1.bf16.msra.mxu0 0
      %655 = vmatprep.subr.bf16.mxu0 0
      %656 = vmatpush1.bf16.msra.mxu0 0
      %657 = vmatprep.subr.bf16.mxu0 0
      %658 = vmatpush1.bf16.msra.mxu0 0
      %659 = vmatprep.subr.bf16.mxu0 0
      %660 = vmatpush1.bf16.msra.mxu0 0
      %661 = vmatprep.subr.bf16.mxu0 0
      %662 = vmatpush1.bf16.msra.mxu0 0
      %663 = vmatprep.mubr.bf16.mxu0 0
      %664 = vmatmul.mubr.bf16.gmra.mrb[0].mxu0 %v622
      %v665 = vpop.f32.mrb[0].mxu0
      %v666 = vadd.f32 0.0, %v665
      %v667 = vpop.f32.mrb[0].mxu0
      %v668 = vadd.f32 0.0, %v667
      %v669 = vpop.f32.mrb[0].mxu0
      %v670 = vpop.f32.mrb[0].mxu0
      %671 = vdwg.mxu0
      %v672 = vpack.c.bf16 %v666, %v666
      %v673 = vpack.c.bf16 %v668, %v668
      %v676 = vcombine.low %v672, %v673
      %v678 = vunpack.c.l.s4 1983009808
      %v679 = vunpack.c.0.s8 %v678
      %v680 = vlaneseq
      %v681 = vshrl.u32 %v680, 7
      %v682 = vsub.s32 %v679, %v681
      %v683 = vrot.slane %v676, %v682
      %685 = vst [vmem:[%s249] sm:$0xf] %v683
      %v686 = vunpack.c.l.bf16 %v672
      %v687 = vunpack.c.l.bf16 %v673
      %v688 = vsel %vm375, %v686, 0.0
      %v689 = vsel %vm375, %v687, 0.0
      %v690 = vadd.f32 %v688, %v689
      %691 = vadd.xlane.f32.xlu0 %v690
      %v692 = vpop.xlane.xlu0 %691
      %v693 = vmul.f32 %v686, %v686
      %v694 = vmul.f32 %v687, %v687
      %v695 = vsel %vm375, %v693, 0.0
      %v696 = vsel %vm375, %v694, 0.0
      %v697 = vadd.f32 %v695, %v696
      %698 = vadd.xlane.f32.xlu0 %v697
      %v699 = vpop.xlane.xlu0 %698
      // Predicated region
      $region45: #{sep_conv_3x3.4} parent=39 // pred_check
        %p700 = pneg %p251
      $region46: #{sep_conv_3x3.4} parent=39 // pred_check_branch
        %702 = sbr.rel (%p700) target = $region48
      $region47: #{sep_conv_3x3.4} parent=39 // pred_region
        %vm703 = vcmask 11264
        %704 = vst.msk [vmem:[%s6] sm:$0xf] %vm703, 0.0
      $region48: #{sep_conv_3x3.4} parent=39 // pred_fallthru
        _
      %v705 = vld [vmem:[%s6] sm:$0xf]
      %v706 = vsel %vm486, %v692, %v699
      %v707 = vadd.f32 %v705, %v706
      %vm708 = vcmask 11264
      %709 = vst.msk [vmem:[%s6] sm:$0xf] %vm708, %v707
      %p710 = scmp.lt.s32.totalorder %s18, 1
      %s711 = scalar_select %p710, %s18, 1
      %s712 = smul.addr %s711, 2
      %s713 = smul.addr %s712, 2
      %s714 = scalar_lea.vmem %s5, %s713
      // Predicated region
      $region49: #{sep_conv_3x3.4} parent=39 // pred_check
        %p715 = pneg %p146
      $region50: #{sep_conv_3x3.4} parent=39 // pred_check_branch
        %717 = sbr.rel (%p715) target = $region52
      $region51: #{sep_conv_3x3.4} parent=39 // pred_region
        _
      $region52: #{sep_conv_3x3.4} parent=39 // pred_fallthru
        _
      // Predicated region
      $region53: #{sep_conv_3x3.4} parent=39 // pred_check
        %p718 = pneg %p167
      $region54: #{sep_conv_3x3.4} parent=39 // pred_check_branch
        %720 = sbr.rel (%p718) target = $region56
      $region55: #{sep_conv_3x3.4} parent=39 // pred_region
        _
      $region56: #{sep_conv_3x3.4} parent=39 // pred_fallthru
        _
      // Predicated region
      $region57: #{sep_conv_3x3.4} parent=39 // pred_check
        %p721 = pneg %p167
      $region58: #{sep_conv_3x3.4} parent=39 // pred_check_branch
        %723 = sbr.rel (%p721) target = $region60
      $region59: #{sep_conv_3x3.4} parent=39 // pred_region
        _
      $region60: #{sep_conv_3x3.4} parent=39 // pred_fallthru
        _
    $region40: #{sep_conv_3x3.4} parent=5 // pred_fallthru
      _
    %p724 = scmp.le.s32.totalorder 2, %s13
    // Predicated region
    $region61: #{sep_conv_3x3.4} parent=5 // pred_check
      %p725 = pneg %p724
    $region62: #{sep_conv_3x3.4} parent=5 // pred_check_branch
      %727 = sbr.rel (%p725) target = $region64
    $region63: #{sep_conv_3x3.4} parent=5 // pred_region
      %s728 = ssub.s32 %s13, 2
      // Predicated region
      $region65: #{sep_conv_3x3.4} parent=63 // pred_check
        %p729 = pneg %p152
      $region66: #{sep_conv_3x3.4} parent=63 // pred_check_branch
        %731 = sbr.rel (%p729) target = $region68
      $region67: #{sep_conv_3x3.4} parent=63 // pred_region
        %p732 = scmp.lt.s32.totalorder %s19, 1
        %s733 = scalar_select %p732, %s19, 1
        %s734 = smul.addr %s733, 2
        %s735 = smul.addr %s734, 2
        %s736 = scalar_lea.vmem %s5, %s735
      $region68: #{sep_conv_3x3.4} parent=63 // pred_fallthru
        _
    $region64: #{sep_conv_3x3.4} parent=5 // pred_fallthru
      _
  $region6: #{sep_conv_3x3.4} parent=0 // loop_footer
    %s17 = sadd.s32 1, %s13
  $region7: #{sep_conv_3x3.4} parent=0 // loop_footer_branch
    %12 = sbr.rel target = $region3
  $region8: #{sep_conv_3x3.4} parent=0 // loop_exit
    _

</llo_original>
